<compile_context>
chip_gen: v6e
topology: v6e:2x2x1
jax: 0.10.0
libtpu: 0.0.40
codegen_flags: <defaults>
</compile_context>

<pallas_src>
import jax
import jax.numpy as jnp
from jax.experimental import pallas as pl
from jax.experimental.pallas import tpu as pltpu

STATE_DIM = 14                      # len(SnakeGame.get_state()) == 14
ACTION_DIM = 4
IN_DIM = STATE_DIM + ACTION_DIM     # 18
K_PAD = 128                         # fc1 contraction padded to one lane group
HIDDEN_DIM = 512 + 256              # 768
DEFAULT_BLOCK_B = 1024              # batch rows per grid step (upper bound)


def _round_up(x, m):
    return ((x + m - 1) // m) * m


def _cdiv(a, b):
    return (a + b - 1) // b


def qnet_kernel(x_ref, w1_ref, b1_ref, w2_ref, b2_ref, w3_ref, b3_ref, o_ref):
    # x_ref: (TB, 128) bf16, already [state | action | zero pad] from wrapper.
    x = x_ref[...]

    # fc1 + relu: bf16 MXU matmul, f32 accumulate, f32 bias/ReLU on the VPU.
    h1 = jnp.dot(x, w1_ref[...], preferred_element_type=jnp.float32) + b1_ref[...]
    h1 = jnp.maximum(h1, 0.0).astype(jnp.bfloat16)                 # (TB, 768)

    # fc2 + relu.
    h2 = jnp.dot(h1, w2_ref[...], preferred_element_type=jnp.float32) + b2_ref[...]
    h2 = jnp.maximum(h2, 0.0).astype(jnp.bfloat16)                 # (TB, 768)

    # fc3 on the MXU: w3 is zero-padded to (768, 128); only column 0 is real.
    r3 = jnp.dot(h2, w3_ref[...], preferred_element_type=jnp.float32)  # (TB, 128)
    o_ref[...] = (r3[:, 0:1] + b3_ref[...]).astype(o_ref.dtype)        # (TB, 1)


def qnetwork_forward(state, action, params, *, block_b=DEFAULT_BLOCK_B):
    """state: (B, 14) f32, action: (B, 4) f32 -> (B, 1) f32."""
    w1, b1, w2, b2, w3, b3 = params
    B = state.shape[0]

    # --- choose batch tile ---------------------------------------------------
    # Pad to a sublane multiple (8).  For batches >= 512 force >= 2 grid steps
    # (so both v7x TensorCores get work) with an MXU-friendly tile (mult of
    # 128), capped at block_b.
    b8 = _round_up(max(B, 1), 8)
    if b8 < 512:
        tb = b8
    else:
        n_tiles = max(2, _cdiv(b8, block_b))
        tb = min(block_b, _round_up(_cdiv(b8, n_tiles), 128))
    b_pad = _round_up(b8, tb)
    grid = (b_pad // tb,)

    # --- hoisted input assembly: concat + zero-pad to 128 lanes + bf16 cast --
    x = jnp.concatenate([state, action], axis=1)                   # (B, 18) f32
    x = jnp.pad(x, ((0, b_pad - B), (0, K_PAD - IN_DIM)))          # (b_pad, 128)
    x = x.astype(jnp.bfloat16)

    def resident(shape):
        # Same block every grid step -> DMA'd once, stays VMEM-resident.
        return pl.BlockSpec(shape, lambda i: (0, 0))

    out = pl.pallas_call(
        qnet_kernel,
        out_shape=jax.ShapeDtypeStruct((b_pad, 1), jnp.float32),
        grid=grid,
        in_specs=[
            pl.BlockSpec((tb, K_PAD), lambda i: (i, 0)),            # x tile (bf16)
            resident((K_PAD, HIDDEN_DIM)),                          # w1 (padded, bf16)
            resident((1, HIDDEN_DIM)),                              # b1 (f32)
            resident((HIDDEN_DIM, HIDDEN_DIM)),                     # w2 (bf16)
            resident((1, HIDDEN_DIM)),                              # b2 (f32)
            resident((HIDDEN_DIM, K_PAD)),                          # w3 (padded, bf16)
            resident((1, 1)),                                       # b3 (f32)
        ],
        out_specs=pl.BlockSpec((tb, 1), lambda i: (i, 0)),
        compiler_params=pltpu.CompilerParams(
            dimension_semantics=("parallel",)),
    )(x, w1, b1, w2, b2, w3, b3)
    return out[:B]


def init_params(key):
    """nn.Linear-style init. Weights stored (in, out) bf16, biases (1, out) f32.

    fc1's weight is zero-padded from (18, 768) to (128, 768): the padded input
    columns (which are zero anyway) hit zero rows.  fc3's weight is stored
    zero-padded from (768, 1) to (768, 128) so fc3 runs on the MXU; column 0
    of the result is the real output.
    """
    dims = [(IN_DIM, HIDDEN_DIM), (HIDDEN_DIM, HIDDEN_DIM), (HIDDEN_DIM, 1)]
    raw = []
    for fan_in, fan_out in dims:
        key, kw, kb = jax.random.split(key, 3)
        bound = 1.0 / jnp.sqrt(float(fan_in))
        w = jax.random.uniform(kw, (fan_in, fan_out), jnp.float32, -bound, bound)
        b = jax.random.uniform(kb, (1, fan_out), jnp.float32, -bound, bound)
        raw.append((w, b))
    (w1, b1), (w2, b2), (w3, b3) = raw
    w1_pad = jnp.zeros((K_PAD, HIDDEN_DIM), jnp.float32).at[:IN_DIM].set(w1)
    w3_pad = jnp.zeros((HIDDEN_DIM, K_PAD), jnp.float32).at[:, 0:1].set(w3)
    return (
        w1_pad.astype(jnp.bfloat16), b1,
        w2.astype(jnp.bfloat16), b2,
        w3_pad.astype(jnp.bfloat16), b3.reshape(1, 1),
    )


def _ref_forward(state, action, params):
    """Plain-JAX reference using the same (bf16-stored) weights in f32 math."""
    w1, b1, w2, b2, w3, b3 = params
    x = jnp.concatenate([state, action], axis=1)
    w1f = w1.astype(jnp.float32)[:IN_DIM]          # un-pad fc1's weight
    w3f = w3.astype(jnp.float32)[:, 0:1]           # un-pad fc3's weight
    h = jnp.maximum(x @ w1f + b1, 0.0)
    h = jnp.maximum(h @ w2.astype(jnp.float32) + b2, 0.0)
    return h @ w3f + b3


if __name__ == "__main__":
    key = jax.random.PRNGKey(0)
    kp, ks, ka = jax.random.split(key, 3)

    params = init_params(kp)

    # --- small batch (single grid step) ---
    B = 2
    state = jax.random.normal(ks, (B, STATE_DIM), jnp.float32)
    action = jax.random.normal(ka, (B, ACTION_DIM), jnp.float32)

    out = qnetwork_forward(state, action, params)
    jax.block_until_ready(out)
    assert out.shape == (B, 1)
    ref = _ref_forward(state, action, params)
    # bf16 activations in the kernel vs f32 reference -> looser tolerance.
    assert jnp.allclose(out, ref, atol=5e-2, rtol=5e-2), (
        float(jnp.max(jnp.abs(out - ref))))

    # --- larger batch exercising the multi-step (two-TensorCore) grid path ---
    B2 = 640
    ks2, ka2 = jax.random.split(jax.random.PRNGKey(1))
    state2 = jax.random.normal(ks2, (B2, STATE_DIM), jnp.float32)
    action2 = jax.random.normal(ka2, (B2, ACTION_DIM), jnp.float32)

    out2 = qnetwork_forward(state2, action2, params)
    jax.block_until_ready(out2)
    assert out2.shape == (B2, 1)
    ref2 = _ref_forward(state2, action2, params)
    assert jnp.allclose(out2, ref2, atol=5e-2, rtol=5e-2), (
        float(jnp.max(jnp.abs(out2 - ref2))))

    print("KERNEL_OK")
</pallas_src>

<mosaic_0001>
module attributes {stable_mosaic.version = 11 : i64} {
  func.func @qnet_kernel(%arg0: i32, %arg1: memref<8x128xbf16, #tpu.memory_space<vmem>>, %arg2: memref<128x768xbf16, #tpu.memory_space<vmem>>, %arg3: memref<1x768xf32, #tpu.memory_space<vmem>>, %arg4: memref<768x768xbf16, #tpu.memory_space<vmem>>, %arg5: memref<1x768xf32, #tpu.memory_space<vmem>>, %arg6: memref<768x128xbf16, #tpu.memory_space<vmem>>, %arg7: memref<1x1xf32, #tpu.memory_space<vmem>>, %arg8: memref<8x1xf32, #tpu.memory_space<vmem>>) attributes {dimension_semantics = [#tpu.dimension_semantics<parallel>], iteration_bounds = array<i64: 1>, scalar_prefetch = 0 : i64, scratch_operands = 0 : i64, tpu.core_type = #tpu.core_type<tc>, window_params = [{transform_indices = @transform_0, window_bounds = array<i64: 8, 128>}, {pipeline_mode = #tpu.pipeline_mode<synchronous>, transform_indices = @transform_1, window_bounds = array<i64: 128, 768>}, {pipeline_mode = #tpu.pipeline_mode<synchronous>, transform_indices = @transform_2, window_bounds = array<i64: 1, 768>}, {pipeline_mode = #tpu.pipeline_mode<synchronous>, transform_indices = @transform_3, window_bounds = array<i64: 768, 768>}, {pipeline_mode = #tpu.pipeline_mode<synchronous>, transform_indices = @transform_4, window_bounds = array<i64: 1, 768>}, {pipeline_mode = #tpu.pipeline_mode<synchronous>, transform_indices = @transform_5, window_bounds = array<i64: 768, 128>}, {pipeline_mode = #tpu.pipeline_mode<synchronous>, transform_indices = @transform_6, window_bounds = array<i64: 1, 1>}, {transform_indices = @transform_7, window_bounds = array<i64: 8, 1>}]} {
    %c0 = arith.constant 0 : index
    %c0_0 = arith.constant 0 : index
    %0 = vector.load %arg1[%c0, %c0_0] : memref<8x128xbf16, #tpu.memory_space<vmem>>, vector<8x128xbf16>
    %c0_1 = arith.constant 0 : index
    %c0_2 = arith.constant 0 : index
    %1 = vector.load %arg2[%c0_1, %c0_2] : memref<128x768xbf16, #tpu.memory_space<vmem>>, vector<128x768xbf16>
    %cst = arith.constant dense<0.000000e+00> : vector<8x768xf32>
    %2 = tpu.matmul %0, %1, %cst {dimension_numbers = #tpu.dot_dimension_numbers<[1], [0], [0], [1], [0, 0, 1, 1], [], []>} : vector<8x128xbf16>, vector<128x768xbf16>, vector<8x768xf32> -> vector<8x768xf32>
    %c0_3 = arith.constant 0 : index
    %c0_4 = arith.constant 0 : index
    %3 = vector.load %arg3[%c0_3, %c0_4] : memref<1x768xf32, #tpu.memory_space<vmem>>, vector<1x768xf32>
    %4 = vector.broadcast %3 : vector<1x768xf32> to vector<8x768xf32>
    %5 = arith.addf %2, %4 : vector<8x768xf32>
    %cst_5 = arith.constant 0.000000e+00 : f32
    %6 = vector.broadcast %cst_5 : f32 to vector<8x768xf32>
    %7 = arith.maximumf %5, %6 : vector<8x768xf32>
    %8 = arith.truncf %7 : vector<8x768xf32> to vector<8x768xbf16>
    %c0_6 = arith.constant 0 : index
    %c0_7 = arith.constant 0 : index
    %9 = vector.load %arg4[%c0_6, %c0_7] : memref<768x768xbf16, #tpu.memory_space<vmem>>, vector<768x768xbf16>
    %cst_8 = arith.constant dense<0.000000e+00> : vector<8x768xf32>
    %10 = tpu.matmul %8, %9, %cst_8 {dimension_numbers = #tpu.dot_dimension_numbers<[1], [0], [0], [1], [0, 0, 1, 1], [], []>} : vector<8x768xbf16>, vector<768x768xbf16>, vector<8x768xf32> -> vector<8x768xf32>
    %c0_9 = arith.constant 0 : index
    %c0_10 = arith.constant 0 : index
    %11 = vector.load %arg5[%c0_9, %c0_10] : memref<1x768xf32, #tpu.memory_space<vmem>>, vector<1x768xf32>
    %12 = vector.broadcast %11 : vector<1x768xf32> to vector<8x768xf32>
    %13 = arith.addf %10, %12 : vector<8x768xf32>
    %cst_11 = arith.constant 0.000000e+00 : f32
    %14 = vector.broadcast %cst_11 : f32 to vector<8x768xf32>
    %15 = arith.maximumf %13, %14 : vector<8x768xf32>
    %16 = arith.truncf %15 : vector<8x768xf32> to vector<8x768xbf16>
    %c0_12 = arith.constant 0 : index
    %c0_13 = arith.constant 0 : index
    %17 = vector.load %arg6[%c0_12, %c0_13] : memref<768x128xbf16, #tpu.memory_space<vmem>>, vector<768x128xbf16>
    %cst_14 = arith.constant dense<0.000000e+00> : vector<8x128xf32>
    %18 = tpu.matmul %16, %17, %cst_14 {dimension_numbers = #tpu.dot_dimension_numbers<[1], [0], [0], [1], [0, 0, 1, 1], [], []>} : vector<8x768xbf16>, vector<768x128xbf16>, vector<8x128xf32> -> vector<8x128xf32>
    %19 = vector.extract_strided_slice %18 {offsets = [0, 0], sizes = [8, 1], strides = [1, 1]} : vector<8x128xf32> to vector<8x1xf32>
    %c0_15 = arith.constant 0 : index
    %c0_16 = arith.constant 0 : index
    %20 = vector.load %arg7[%c0_15, %c0_16] : memref<1x1xf32, #tpu.memory_space<vmem>>, vector<1x1xf32>
    %21 = vector.broadcast %20 : vector<1x1xf32> to vector<8x1xf32>
    %22 = arith.addf %19, %21 : vector<8x1xf32>
    %c0_17 = arith.constant 0 : index
    %c0_18 = arith.constant 0 : index
    %23 = vector.load %arg8[%c0_17, %c0_18] : memref<8x1xf32, #tpu.memory_space<vmem>>, vector<8x1xf32>
    tpu.vector_store %arg8[%c0_17, %c0_18], %22 {strides = array<i32>} : memref<8x1xf32, #tpu.memory_space<vmem>>, vector<8x1xf32>,
    return
  }
  func.func @transform_0(%arg0: i32) -> (i32, i32) {
    %c0_i32 = arith.constant 0 : i32
    %c0_i32_0 = arith.constant 0 : i32
    return %arg0, %c0_i32 : i32, i32
  }
  func.func @transform_1(%arg0: i32) -> (i32, i32) {
    %c0_i32 = arith.constant 0 : i32
    %c0_i32_0 = arith.constant 0 : i32
    %c0_i32_1 = arith.constant 0 : i32
    return %c0_i32, %c0_i32_0 : i32, i32
  }
  func.func @transform_2(%arg0: i32) -> (i32, i32) {
    %c0_i32 = arith.constant 0 : i32
    %c0_i32_0 = arith.constant 0 : i32
    %c0_i32_1 = arith.constant 0 : i32
    return %c0_i32, %c0_i32_0 : i32, i32
  }
  func.func @transform_3(%arg0: i32) -> (i32, i32) {
    %c0_i32 = arith.constant 0 : i32
    %c0_i32_0 = arith.constant 0 : i32
    %c0_i32_1 = arith.constant 0 : i32
    return %c0_i32, %c0_i32_0 : i32, i32
  }
  func.func @transform_4(%arg0: i32) -> (i32, i32) {
    %c0_i32 = arith.constant 0 : i32
    %c0_i32_0 = arith.constant 0 : i32
    %c0_i32_1 = arith.constant 0 : i32
    return %c0_i32, %c0_i32_0 : i32, i32
  }
  func.func @transform_5(%arg0: i32) -> (i32, i32) {
    %c0_i32 = arith.constant 0 : i32
    %c0_i32_0 = arith.constant 0 : i32
    %c0_i32_1 = arith.constant 0 : i32
    return %c0_i32, %c0_i32_0 : i32, i32
  }
  func.func @transform_6(%arg0: i32) -> (i32, i32) {
    %c0_i32 = arith.constant 0 : i32
    %c0_i32_0 = arith.constant 0 : i32
    %c0_i32_1 = arith.constant 0 : i32
    return %c0_i32, %c0_i32_0 : i32, i32
  }
  func.func @transform_7(%arg0: i32) -> (i32, i32) {
    %c0_i32 = arith.constant 0 : i32
    %c0_i32_0 = arith.constant 0 : i32
    return %arg0, %c0_i32 : i32, i32
  }
}

</mosaic_0001>

<llo_original>
// kernel: tpu_custom_call.1
$region0: #{tpu_custom_call.1}
  #allocation0 [shape = 'u32[]', space=smem, size = 0x4, offset = 0x4, fixed_abs, tag = 'smem constant byte address 0x4 - core index']
  #allocation1 [shape = 'u32[144,128]{1,0:T(1,128)}', space=vmem, size = 0x12000, scoped, tag = 'internal scratch']
  #allocation2 [shape = 'f32[1,1]{1,0:T(1,128)S(1)}', space=vmem, size = 0x200, scoped, tag = 'scoped memory for tpu_custom_call.1']
  %s0 = inlined_call_operand.hbm [shape: bf16[8,128], index: 0, kind: input, shape index: {}]
  %s1 = inlined_call_operand.hbm [shape: bf16[128,768], index: 1, kind: input, shape index: {}]
  %s2 = inlined_call_operand.hbm [shape: f32[1,768], index: 2, kind: input, shape index: {}]
  %s3 = inlined_call_operand.hbm [shape: bf16[768,768], index: 3, kind: input, shape index: {}]
  %s4 = inlined_call_operand.hbm [shape: f32[1,768], index: 4, kind: input, shape index: {}]
  %s5 = inlined_call_operand.hbm [shape: bf16[768,128], index: 5, kind: input, shape index: {}]
  %s6 = inlined_call_operand.<no memory space> [shape: f32[1,1], index: 6, kind: input, shape index: {}]
  %s7 = inlined_call_operand.vmem [shape: f32[8,1], index: 7, kind: output, shape index: {}]
  %s8 = sld [smem:[#allocation0]]
  $region62: #{tpu_custom_call.1} parent=0
    _
  %s10 = ssub.s32 1, %s8
  %s11 = scalar_select 0, %s10, %s8
  %v12 = vstv %s6
  %13 = vst [vmem:[#allocation2] sm:$0x1] %v12
  $region1: #{tpu_custom_call.1} parent=0
    #allocation3 [shape = 'u8[2048]{0}', space=vmem, size = 0x800, scoped, tag = 'input window, operand 0, single buffered']
    #allocation4 [shape = 's32[1]{0}', space=sflag, size = 0x4, scoped, tag = 'scoped memory for tpu_custom_call.1']
    #allocation5 [shape = 'u8[196608]{0}', space=vmem, size = 0x30000, scoped, tag = 'input window, operand 1, single buffered']
    #allocation6 [shape = 's32[1]{0}', space=sflag, size = 0x4, scoped, tag = 'scoped memory for tpu_custom_call.1']
    #allocation7 [shape = 'u8[3072]{0}', space=vmem, size = 0xc00, scoped, tag = 'input window, operand 2, single buffered']
    #allocation8 [shape = 'u8[1179648]{0}', space=vmem, size = 0x120000, scoped, tag = 'input window, operand 3, single buffered']
    #allocation9 [shape = 's32[1]{0}', space=sflag, size = 0x4, scoped, tag = 'scoped memory for tpu_custom_call.1']
    #allocation10 [shape = 'u8[3072]{0}', space=vmem, size = 0xc00, scoped, tag = 'input window, operand 4, single buffered']
    #allocation11 [shape = 'u8[196608]{0}', space=vmem, size = 0x30000, scoped, tag = 'input window, operand 5, single buffered']
    #allocation12 [shape = 's32[1]{0}', space=sflag, size = 0x4, scoped, tag = 'scoped memory for tpu_custom_call.1']
    %14 = vsyncpa [#allocation4], 0
    %15 = vsyncpa [#allocation6], 0
    %16 = vsyncpa [#allocation9], 0
    %17 = vsyncpa [#allocation12], 0
    // Predicated region
    $region2: #{tpu_custom_call.1} parent=1 // pred_check
      _
    $region3: #{tpu_custom_call.1} parent=1 // pred_check_branch
      %19 = sbr.rel (0) target = $region5
    $region4: #{tpu_custom_call.1} parent=1 // pred_region
      %s21 = ssub.s32 64, 64
      %22 = vsyncadd [#allocation4], %s21
      %s24 = sshll.u32 [#allocation3], 4
      %s25 = int_to_ptr.vmem [resolvable:$true] %s24
      %27 = dma.hbm_to_vmem [thread:$0]  %s0, 64, %s25, [#allocation4]
    $region5: #{tpu_custom_call.1} parent=1 // pred_fallthru
      _
    // Predicated region
    $region6: #{tpu_custom_call.1} parent=1 // pred_check
      _
    $region7: #{tpu_custom_call.1} parent=1 // pred_check_branch
      %29 = sbr.rel (0) target = $region9
    $region8: #{tpu_custom_call.1} parent=1 // pred_region
      %s31 = ssub.s32 6144, 6144
      %32 = vsyncadd [#allocation6], %s31
      %s33 = sshll.u32 [#allocation5], 4
      %s34 = int_to_ptr.vmem [resolvable:$true] %s33
      %39 = dma.hbm_to_vmem [thread:$0]  %s1, 6144, %s34, [#allocation6], 384, 384, 24
    $region9: #{tpu_custom_call.1} parent=1 // pred_fallthru
      _
    // Predicated region
    $region10: #{tpu_custom_call.1} parent=1 // pred_check
      _
    $region11: #{tpu_custom_call.1} parent=1 // pred_check_branch
      %41 = sbr.rel (0) target = $region13
    $region12: #{tpu_custom_call.1} parent=1 // pred_region
      %s43 = ssub.s32 96, 96
      %44 = vsyncadd [#allocation6], %s43
      %s46 = sshll.u32 [#allocation7], 4
      %s47 = int_to_ptr.vmem [resolvable:$true] %s46
      %49 = dma.hbm_to_vmem [thread:$0]  %s2, 96, %s47, [#allocation6]
    $region13: #{tpu_custom_call.1} parent=1 // pred_fallthru
      _
    // Predicated region
    $region14: #{tpu_custom_call.1} parent=1 // pred_check
      _
    $region15: #{tpu_custom_call.1} parent=1 // pred_check_branch
      %51 = sbr.rel (0) target = $region17
    $region16: #{tpu_custom_call.1} parent=1 // pred_region
      %s53 = ssub.s32 36864, 36864
      %54 = vsyncadd [#allocation9], %s53
      %s55 = sshll.u32 [#allocation8], 4
      %s56 = int_to_ptr.vmem [resolvable:$true] %s55
      %61 = dma.hbm_to_vmem [thread:$0]  %s3, 36864, %s56, [#allocation9], 384, 384, 24
    $region17: #{tpu_custom_call.1} parent=1 // pred_fallthru
      _
    // Predicated region
    $region18: #{tpu_custom_call.1} parent=1 // pred_check
      _
    $region19: #{tpu_custom_call.1} parent=1 // pred_check_branch
      %63 = sbr.rel (0) target = $region21
    $region20: #{tpu_custom_call.1} parent=1 // pred_region
      %s65 = ssub.s32 96, 96
      %66 = vsyncadd [#allocation9], %s65
      %s68 = sshll.u32 [#allocation10], 4
      %s69 = int_to_ptr.vmem [resolvable:$true] %s68
      %71 = dma.hbm_to_vmem [thread:$0]  %s4, 96, %s69, [#allocation9]
    $region21: #{tpu_custom_call.1} parent=1 // pred_fallthru
      _
    // Predicated region
    $region22: #{tpu_custom_call.1} parent=1 // pred_check
      _
    $region23: #{tpu_custom_call.1} parent=1 // pred_check_branch
      %73 = sbr.rel (0) target = $region25
    $region24: #{tpu_custom_call.1} parent=1 // pred_region
      %s75 = ssub.s32 6144, 6144
      %76 = vsyncadd [#allocation12], %s75
      %s77 = sshll.u32 [#allocation11], 4
      %s78 = int_to_ptr.vmem [resolvable:$true] %s77
      %83 = dma.hbm_to_vmem [thread:$0]  %s5, 6144, %s78, [#allocation12], 64, 64, 4
    $region25: #{tpu_custom_call.1} parent=1 // pred_fallthru
      _
    // Predicated region
    $region26: #{tpu_custom_call.1} parent=1 // pred_check
      _
    $region27: #{tpu_custom_call.1} parent=1 // pred_check_branch
      %85 = sbr.rel (0) target = $region29
    $region28: #{tpu_custom_call.1} parent=1 // pred_region
      _
    $region29: #{tpu_custom_call.1} parent=1 // pred_fallthru
      _
    // Predicated region
    $region30: #{tpu_custom_call.1} parent=1 // pred_check
      _
    $region31: #{tpu_custom_call.1} parent=1 // pred_check_branch
      %87 = sbr.rel (0) target = $region33
    $region32: #{tpu_custom_call.1} parent=1 // pred_region
      %88 = dma.done [#allocation4], 64
    $region33: #{tpu_custom_call.1} parent=1 // pred_fallthru
      _
    // Predicated region
    $region34: #{tpu_custom_call.1} parent=1 // pred_check
      _
    $region35: #{tpu_custom_call.1} parent=1 // pred_check_branch
      %90 = sbr.rel (0) target = $region37
    $region36: #{tpu_custom_call.1} parent=1 // pred_region
      %91 = dma.done [#allocation6], 6144
    $region37: #{tpu_custom_call.1} parent=1 // pred_fallthru
      _
    // Predicated region
    $region38: #{tpu_custom_call.1} parent=1 // pred_check
      _
    $region39: #{tpu_custom_call.1} parent=1 // pred_check_branch
      %93 = sbr.rel (0) target = $region41
    $region40: #{tpu_custom_call.1} parent=1 // pred_region
      %94 = dma.done [#allocation6], 96
    $region41: #{tpu_custom_call.1} parent=1 // pred_fallthru
      _
    // Predicated region
    $region42: #{tpu_custom_call.1} parent=1 // pred_check
      _
    $region43: #{tpu_custom_call.1} parent=1 // pred_check_branch
      %96 = sbr.rel (0) target = $region45
    $region44: #{tpu_custom_call.1} parent=1 // pred_region
      %97 = dma.done [#allocation9], 36864
    $region45: #{tpu_custom_call.1} parent=1 // pred_fallthru
      _
    // Predicated region
    $region46: #{tpu_custom_call.1} parent=1 // pred_check
      _
    $region47: #{tpu_custom_call.1} parent=1 // pred_check_branch
      %99 = sbr.rel (0) target = $region49
    $region48: #{tpu_custom_call.1} parent=1 // pred_region
      %100 = dma.done [#allocation9], 96
    $region49: #{tpu_custom_call.1} parent=1 // pred_fallthru
      _
    // Predicated region
    $region50: #{tpu_custom_call.1} parent=1 // pred_check
      _
    $region51: #{tpu_custom_call.1} parent=1 // pred_check_branch
      %102 = sbr.rel (0) target = $region53
    $region52: #{tpu_custom_call.1} parent=1 // pred_region
      %103 = dma.done [#allocation12], 6144
    $region53: #{tpu_custom_call.1} parent=1 // pred_fallthru
      _
    %v105 = vld [vmem:[#allocation3] sm:$0xf]
    %v106 = vld [vmem:[#allocation5] sm:$0xff]
    %v107 = vld [vmem:[#allocation5 + $0x8] sm:$0xff]
    %v108 = vld [vmem:[#allocation5 + $0x10] sm:$0xff]
    %v109 = vld [vmem:[#allocation5 + $0x18] sm:$0xff]
    %v110 = vld [vmem:[#allocation5 + $0x20] sm:$0xff]
    %v111 = vld [vmem:[#allocation5 + $0x28] sm:$0xff]
    %v112 = vld [vmem:[#allocation5 + $0x30] sm:$0xff]
    %v113 = vld [vmem:[#allocation5 + $0x38] sm:$0xff]
    %v114 = vld [vmem:[#allocation5 + $0x40] sm:$0xff]
    %v115 = vld [vmem:[#allocation5 + $0x48] sm:$0xff]
    %v116 = vld [vmem:[#allocation5 + $0x50] sm:$0xff]
    %v117 = vld [vmem:[#allocation5 + $0x58] sm:$0xff]
    %v118 = vld [vmem:[#allocation5 + $0x60] sm:$0xff]
    %v119 = vld [vmem:[#allocation5 + $0x68] sm:$0xff]
    %v120 = vld [vmem:[#allocation5 + $0x70] sm:$0xff]
    %v121 = vld [vmem:[#allocation5 + $0x78] sm:$0xff]
    %v122 = vld [vmem:[#allocation5 + $0x80] sm:$0xff]
    %v123 = vld [vmem:[#allocation5 + $0x88] sm:$0xff]
    %v124 = vld [vmem:[#allocation5 + $0x90] sm:$0xff]
    %v125 = vld [vmem:[#allocation5 + $0x98] sm:$0xff]
    %v126 = vld [vmem:[#allocation5 + $0xa0] sm:$0xff]
    %v127 = vld [vmem:[#allocation5 + $0xa8] sm:$0xff]
    %v128 = vld [vmem:[#allocation5 + $0xb0] sm:$0xff]
    %v129 = vld [vmem:[#allocation5 + $0xb8] sm:$0xff]
    %v130 = vld [vmem:[#allocation5 + $0xc0] sm:$0xff]
    %v131 = vld [vmem:[#allocation5 + $0xc8] sm:$0xff]
    %v132 = vld [vmem:[#allocation5 + $0xd0] sm:$0xff]
    %v133 = vld [vmem:[#allocation5 + $0xd8] sm:$0xff]
    %v134 = vld [vmem:[#allocation5 + $0xe0] sm:$0xff]
    %v135 = vld [vmem:[#allocation5 + $0xe8] sm:$0xff]
    %v136 = vld [vmem:[#allocation5 + $0xf0] sm:$0xff]
    %v137 = vld [vmem:[#allocation5 + $0xf8] sm:$0xff]
    %v138 = vld [vmem:[#allocation5 + $0x100] sm:$0xff]
    %v139 = vld [vmem:[#allocation5 + $0x108] sm:$0xff]
    %v140 = vld [vmem:[#allocation5 + $0x110] sm:$0xff]
    %v141 = vld [vmem:[#allocation5 + $0x118] sm:$0xff]
    %v142 = vld [vmem:[#allocation5 + $0x120] sm:$0xff]
    %v143 = vld [vmem:[#allocation5 + $0x128] sm:$0xff]
    %v144 = vld [vmem:[#allocation5 + $0x130] sm:$0xff]
    %v145 = vld [vmem:[#allocation5 + $0x138] sm:$0xff]
    %v146 = vld [vmem:[#allocation5 + $0x140] sm:$0xff]
    %v147 = vld [vmem:[#allocation5 + $0x148] sm:$0xff]
    %v148 = vld [vmem:[#allocation5 + $0x150] sm:$0xff]
    %v149 = vld [vmem:[#allocation5 + $0x158] sm:$0xff]
    %v150 = vld [vmem:[#allocation5 + $0x160] sm:$0xff]
    %v151 = vld [vmem:[#allocation5 + $0x168] sm:$0xff]
    %v152 = vld [vmem:[#allocation5 + $0x170] sm:$0xff]
    %v153 = vld [vmem:[#allocation5 + $0x178] sm:$0xff]
    %v154 = vld [vmem:[#allocation7] sm:$0x3f]
    %v156 = vlaneseq
    %v157 = vshrl.u32 %v156, 7
    %v158 = vsub.s32 0, %v157
    %v159 = vrot.slane %v154, %v158
    %v160 = vlaneseq
    %v161 = vshrl.u32 %v160, 7
    %v162 = vsub.s32 1, %v161
    %v163 = vrot.slane %v154, %v162
    %v164 = vlaneseq
    %v165 = vshrl.u32 %v164, 7
    %v166 = vsub.s32 2, %v165
    %v167 = vrot.slane %v154, %v166
    %v168 = vlaneseq
    %v169 = vshrl.u32 %v168, 7
    %v170 = vsub.s32 3, %v169
    %v171 = vrot.slane %v154, %v170
    %v172 = vlaneseq
    %v173 = vshrl.u32 %v172, 7
    %v174 = vsub.s32 4, %v173
    %v175 = vrot.slane %v154, %v174
    %v176 = vlaneseq
    %v177 = vshrl.u32 %v176, 7
    %v178 = vsub.s32 5, %v177
    %v179 = vrot.slane %v154, %v178
    %v234 = vunpack.c.l.b16 %v106
    %v235 = vunpack.c.h.b16 %v106
    %v236 = vunpack.c.l.b16 %v107
    %v237 = vunpack.c.h.b16 %v107
    %v238 = vunpack.c.l.b16 %v108
    %v239 = vunpack.c.h.b16 %v108
    %v240 = vunpack.c.l.b16 %v109
    %v241 = vunpack.c.h.b16 %v109
    %v242 = vunpack.c.l.b16 %v110
    %v243 = vunpack.c.h.b16 %v110
    %v244 = vunpack.c.l.b16 %v111
    %v245 = vunpack.c.h.b16 %v111
    %v246 = vunpack.c.l.b16 %v112
    %v247 = vunpack.c.h.b16 %v112
    %v248 = vunpack.c.l.b16 %v113
    %v249 = vunpack.c.h.b16 %v113
    %v250 = vunpack.c.l.b16 %v114
    %v251 = vunpack.c.h.b16 %v114
    %v252 = vunpack.c.l.b16 %v115
    %v253 = vunpack.c.h.b16 %v115
    %v254 = vunpack.c.l.b16 %v116
    %v255 = vunpack.c.h.b16 %v116
    %v256 = vunpack.c.l.b16 %v117
    %v257 = vunpack.c.h.b16 %v117
    %v258 = vunpack.c.l.b16 %v118
    %v259 = vunpack.c.h.b16 %v118
    %v260 = vunpack.c.l.b16 %v119
    %v261 = vunpack.c.h.b16 %v119
    %v262 = vunpack.c.l.b16 %v120
    %v263 = vunpack.c.h.b16 %v120
    %v264 = vunpack.c.l.b16 %v121
    %v265 = vunpack.c.h.b16 %v121
    %v266 = vunpack.c.l.b16 %v122
    %v267 = vunpack.c.h.b16 %v122
    %v268 = vunpack.c.l.b16 %v123
    %v269 = vunpack.c.h.b16 %v123
    %v270 = vunpack.c.l.b16 %v124
    %v271 = vunpack.c.h.b16 %v124
    %v272 = vunpack.c.l.b16 %v125
    %v273 = vunpack.c.h.b16 %v125
    %v274 = vunpack.c.l.b16 %v126
    %v275 = vunpack.c.h.b16 %v126
    %v276 = vunpack.c.l.b16 %v127
    %v277 = vunpack.c.h.b16 %v127
    %v278 = vunpack.c.l.b16 %v128
    %v279 = vunpack.c.h.b16 %v128
    %v280 = vunpack.c.l.b16 %v129
    %v281 = vunpack.c.h.b16 %v129
    %v282 = vunpack.c.l.b16 %v130
    %v283 = vunpack.c.h.b16 %v130
    %v284 = vunpack.c.l.b16 %v131
    %v285 = vunpack.c.h.b16 %v131
    %v286 = vunpack.c.l.b16 %v132
    %v287 = vunpack.c.h.b16 %v132
    %v288 = vunpack.c.l.b16 %v133
    %v289 = vunpack.c.h.b16 %v133
    %v290 = vunpack.c.l.b16 %v134
    %v291 = vunpack.c.h.b16 %v134
    %v292 = vunpack.c.l.b16 %v135
    %v293 = vunpack.c.h.b16 %v135
    %v294 = vunpack.c.l.b16 %v136
    %v295 = vunpack.c.h.b16 %v136
    %v296 = vunpack.c.l.b16 %v137
    %v297 = vunpack.c.h.b16 %v137
    %v298 = vunpack.c.l.b16 %v138
    %v299 = vunpack.c.h.b16 %v138
    %v300 = vunpack.c.l.b16 %v139
    %v301 = vunpack.c.h.b16 %v139
    %v302 = vunpack.c.l.b16 %v140
    %v303 = vunpack.c.h.b16 %v140
    %v304 = vunpack.c.l.b16 %v141
    %v305 = vunpack.c.h.b16 %v141
    %v306 = vunpack.c.l.b16 %v142
    %v307 = vunpack.c.h.b16 %v142
    %v308 = vunpack.c.l.b16 %v143
    %v309 = vunpack.c.h.b16 %v143
    %v310 = vunpack.c.l.b16 %v144
    %v311 = vunpack.c.h.b16 %v144
    %v312 = vunpack.c.l.b16 %v145
    %v313 = vunpack.c.h.b16 %v145
    %v314 = vunpack.c.l.b16 %v146
    %v315 = vunpack.c.h.b16 %v146
    %v316 = vunpack.c.l.b16 %v147
    %v317 = vunpack.c.h.b16 %v147
    %v318 = vunpack.c.l.b16 %v148
    %v319 = vunpack.c.h.b16 %v148
    %v320 = vunpack.c.l.b16 %v149
    %v321 = vunpack.c.h.b16 %v149
    %v322 = vunpack.c.l.b16 %v150
    %v323 = vunpack.c.h.b16 %v150
    %v324 = vunpack.c.l.b16 %v151
    %v325 = vunpack.c.h.b16 %v151
    %v326 = vunpack.c.l.b16 %v152
    %v327 = vunpack.c.h.b16 %v152
    %v328 = vunpack.c.l.b16 %v153
    %v329 = vunpack.c.h.b16 %v153
    %v330 = vpack.c.b16 %v240, %v234
    %v331 = vpack.c.b16 %v241, %v235
    %v332 = vpack.c.b16 %v242, %v236
    %v333 = vpack.c.b16 %v243, %v237
    %v334 = vpack.c.b16 %v244, %v238
    %v335 = vpack.c.b16 %v245, %v239
    %v336 = vpack.c.b16 %v252, %v246
    %v337 = vpack.c.b16 %v253, %v247
    %v338 = vpack.c.b16 %v254, %v248
    %v339 = vpack.c.b16 %v255, %v249
    %v340 = vpack.c.b16 %v256, %v250
    %v341 = vpack.c.b16 %v257, %v251
    %v342 = vpack.c.b16 %v264, %v258
    %v343 = vpack.c.b16 %v265, %v259
    %v344 = vpack.c.b16 %v266, %v260
    %v345 = vpack.c.b16 %v267, %v261
    %v346 = vpack.c.b16 %v268, %v262
    %v347 = vpack.c.b16 %v269, %v263
    %v348 = vpack.c.b16 %v276, %v270
    %v349 = vpack.c.b16 %v277, %v271
    %v350 = vpack.c.b16 %v278, %v272
    %v351 = vpack.c.b16 %v279, %v273
    %v352 = vpack.c.b16 %v280, %v274
    %v353 = vpack.c.b16 %v281, %v275
    %v354 = vpack.c.b16 %v288, %v282
    %v355 = vpack.c.b16 %v289, %v283
    %v356 = vpack.c.b16 %v290, %v284
    %v357 = vpack.c.b16 %v291, %v285
    %v358 = vpack.c.b16 %v292, %v286
    %v359 = vpack.c.b16 %v293, %v287
    %v360 = vpack.c.b16 %v300, %v294
    %v361 = vpack.c.b16 %v301, %v295
    %v362 = vpack.c.b16 %v302, %v296
    %v363 = vpack.c.b16 %v303, %v297
    %v364 = vpack.c.b16 %v304, %v298
    %v365 = vpack.c.b16 %v305, %v299
    %v366 = vpack.c.b16 %v312, %v306
    %v367 = vpack.c.b16 %v313, %v307
    %v368 = vpack.c.b16 %v314, %v308
    %v369 = vpack.c.b16 %v315, %v309
    %v370 = vpack.c.b16 %v316, %v310
    %v371 = vpack.c.b16 %v317, %v311
    %v372 = vpack.c.b16 %v324, %v318
    %v373 = vpack.c.b16 %v325, %v319
    %v374 = vpack.c.b16 %v326, %v320
    %v375 = vpack.c.b16 %v327, %v321
    %v376 = vpack.c.b16 %v328, %v322
    %v377 = vpack.c.b16 %v329, %v323
    %426 = vmatprep.subr.bf16.mxu0 %v373
    %427 = vmatpush1.bf16.msra.mxu0 %v372
    %428 = vmatprep.subr.bf16.mxu0 %v367
    %429 = vmatpush1.bf16.msra.mxu0 %v366
    %430 = vmatprep.subr.bf16.mxu0 %v361
    %431 = vmatpush1.bf16.msra.mxu0 %v360
    %432 = vmatprep.subr.bf16.mxu0 %v355
    %433 = vmatpush1.bf16.msra.mxu0 %v354
    %434 = vmatprep.subr.bf16.mxu0 %v349
    %435 = vmatpush1.bf16.msra.mxu0 %v348
    %436 = vmatprep.subr.bf16.mxu0 %v343
    %437 = vmatpush1.bf16.msra.mxu0 %v342
    %438 = vmatprep.subr.bf16.mxu0 %v337
    %439 = vmatpush1.bf16.msra.mxu0 %v336
    %440 = vmatprep.subr.bf16.mxu0 %v331
    %441 = vmatpush1.bf16.msra.mxu0 %v330
    %442 = vmatprep.subr.bf16.mxu0 0
    %443 = vmatpush2.bf16.msra.mxu0 0
    %444 = vmatprep.subr.bf16.mxu0 0
    %445 = vmatpush2.bf16.msra.mxu0 0
    %446 = vmatprep.subr.bf16.mxu0 0
    %447 = vmatpush2.bf16.msra.mxu0 0
    %448 = vmatprep.subr.bf16.mxu0 0
    %449 = vmatpush2.bf16.msra.mxu0 0
    %450 = vmatprep.subr.bf16.mxu0 0
    %451 = vmatpush2.bf16.msra.mxu0 0
    %452 = vmatprep.subr.bf16.mxu0 0
    %453 = vmatpush2.bf16.msra.mxu0 0
    %454 = vmatprep.subr.bf16.mxu0 0
    %455 = vmatpush2.bf16.msra.mxu0 0
    %456 = vmatprep.subr.bf16.mxu0 0
    %457 = vmatpush2.bf16.msra.mxu0 0
    %458 = vmatprep.mubr.bf16.mxu0 0
    %459 = vmatmul.mubr.bf16.gmra.mxu0 %v105
    %v460 = vpop.f32.mrf.mxu0
    %v461 = vadd.f32 %v159, %v460
    %v462 = vpop.f32.mrf.mxu0
    %v463 = vadd.f32 %v163, %v462
    %v464 = vpop.f32.mrf.mxu0
    %v465 = vpop.f32.mrf.mxu0
    %466 = vdwg.mxu0
    %467 = vmatprep.subr.bf16.mxu0 %v375
    %468 = vmatpush1.bf16.msra.mxu0 %v374
    %469 = vmatprep.subr.bf16.mxu0 %v369
    %470 = vmatpush1.bf16.msra.mxu0 %v368
    %471 = vmatprep.subr.bf16.mxu0 %v363
    %472 = vmatpush1.bf16.msra.mxu0 %v362
    %473 = vmatprep.subr.bf16.mxu0 %v357
    %474 = vmatpush1.bf16.msra.mxu0 %v356
    %475 = vmatprep.subr.bf16.mxu0 %v351
    %476 = vmatpush1.bf16.msra.mxu0 %v350
    %477 = vmatprep.subr.bf16.mxu0 %v345
    %478 = vmatpush1.bf16.msra.mxu0 %v344
    %479 = vmatprep.subr.bf16.mxu0 %v339
    %480 = vmatpush1.bf16.msra.mxu0 %v338
    %481 = vmatprep.subr.bf16.mxu0 %v333
    %482 = vmatpush1.bf16.msra.mxu0 %v332
    %483 = vmatprep.subr.bf16.mxu0 0
    %484 = vmatpush2.bf16.msra.mxu0 0
    %485 = vmatprep.subr.bf16.mxu0 0
    %486 = vmatpush2.bf16.msra.mxu0 0
    %487 = vmatprep.subr.bf16.mxu0 0
    %488 = vmatpush2.bf16.msra.mxu0 0
    %489 = vmatprep.subr.bf16.mxu0 0
    %490 = vmatpush2.bf16.msra.mxu0 0
    %491 = vmatprep.subr.bf16.mxu0 0
    %492 = vmatpush2.bf16.msra.mxu0 0
    %493 = vmatprep.subr.bf16.mxu0 0
    %494 = vmatpush2.bf16.msra.mxu0 0
    %495 = vmatprep.subr.bf16.mxu0 0
    %496 = vmatpush2.bf16.msra.mxu0 0
    %497 = vmatprep.subr.bf16.mxu0 0
    %498 = vmatpush2.bf16.msra.mxu0 0
    %499 = vmatprep.mubr.bf16.mxu0 0
    %500 = vmatmul.mubr.bf16.gmra.mxu0 %v105
    %v501 = vpop.f32.mrf.mxu0
    %v502 = vadd.f32 %v167, %v501
    %v503 = vpop.f32.mrf.mxu0
    %v504 = vadd.f32 %v171, %v503
    %v505 = vpop.f32.mrf.mxu0
    %v506 = vpop.f32.mrf.mxu0
    %507 = vdwg.mxu0
    %508 = vmatprep.subr.bf16.mxu0 %v377
    %509 = vmatpush1.bf16.msra.mxu0 %v376
    %510 = vmatprep.subr.bf16.mxu0 %v371
    %511 = vmatpush1.bf16.msra.mxu0 %v370
    %512 = vmatprep.subr.bf16.mxu0 %v365
    %513 = vmatpush1.bf16.msra.mxu0 %v364
    %514 = vmatprep.subr.bf16.mxu0 %v359
    %515 = vmatpush1.bf16.msra.mxu0 %v358
    %516 = vmatprep.subr.bf16.mxu0 %v353
    %517 = vmatpush1.bf16.msra.mxu0 %v352
    %518 = vmatprep.subr.bf16.mxu0 %v347
    %519 = vmatpush1.bf16.msra.mxu0 %v346
    %520 = vmatprep.subr.bf16.mxu0 %v341
    %521 = vmatpush1.bf16.msra.mxu0 %v340
    %522 = vmatprep.subr.bf16.mxu0 %v335
    %523 = vmatpush1.bf16.msra.mxu0 %v334
    %524 = vmatprep.subr.bf16.mxu0 0
    %525 = vmatpush2.bf16.msra.mxu0 0
    %526 = vmatprep.subr.bf16.mxu0 0
    %527 = vmatpush2.bf16.msra.mxu0 0
    %528 = vmatprep.subr.bf16.mxu0 0
    %529 = vmatpush2.bf16.msra.mxu0 0
    %530 = vmatprep.subr.bf16.mxu0 0
    %531 = vmatpush2.bf16.msra.mxu0 0
    %532 = vmatprep.subr.bf16.mxu0 0
    %533 = vmatpush2.bf16.msra.mxu0 0
    %534 = vmatprep.subr.bf16.mxu0 0
    %535 = vmatpush2.bf16.msra.mxu0 0
    %536 = vmatprep.subr.bf16.mxu0 0
    %537 = vmatpush2.bf16.msra.mxu0 0
    %538 = vmatprep.subr.bf16.mxu0 0
    %539 = vmatpush2.bf16.msra.mxu0 0
    %540 = vmatprep.mubr.bf16.mxu0 0
    %541 = vmatmul.mubr.bf16.gmra.mxu0 %v105
    %v542 = vpop.f32.mrf.mxu0
    %v543 = vadd.f32 %v175, %v542
    %v544 = vpop.f32.mrf.mxu0
    %v545 = vadd.f32 %v179, %v544
    %v546 = vpop.f32.mrf.mxu0
    %v547 = vpop.f32.mrf.mxu0
    %548 = vdwg.mxu0
    %v549 = vmax.f32 %v461, 0.0
    %v550 = vmax.f32 %v463, 0.0
    %v551 = vmax.f32 %v502, 0.0
    %v552 = vmax.f32 %v504, 0.0
    %v553 = vmax.f32 %v543, 0.0
    %v554 = vmax.f32 %v545, 0.0
    %v555 = vpack.c.bf16 %v549, %v549
    %v556 = vpack.c.bf16 %v550, %v550
    %v557 = vpack.c.bf16 %v551, %v551
    %v558 = vpack.c.bf16 %v552, %v552
    %v559 = vpack.c.bf16 %v553, %v553
    %v560 = vpack.c.bf16 %v554, %v554
    %v561 = vld [vmem:[#allocation8] sm:$0xff]
    %v562 = vld [vmem:[#allocation8 + $0x8] sm:$0xff]
    %v563 = vld [vmem:[#allocation8 + $0x10] sm:$0xff]
    %v564 = vld [vmem:[#allocation8 + $0x18] sm:$0xff]
    %v565 = vld [vmem:[#allocation8 + $0x20] sm:$0xff]
    %v566 = vld [vmem:[#allocation8 + $0x28] sm:$0xff]
    %v567 = vld [vmem:[#allocation8 + $0x30] sm:$0xff]
    %v568 = vld [vmem:[#allocation8 + $0x38] sm:$0xff]
    %v569 = vld [vmem:[#allocation8 + $0x40] sm:$0xff]
    %v570 = vld [vmem:[#allocation8 + $0x48] sm:$0xff]
    %v571 = vld [vmem:[#allocation8 + $0x50] sm:$0xff]
    %v572 = vld [vmem:[#allocation8 + $0x58] sm:$0xff]
    %v573 = vld [vmem:[#allocation8 + $0x60] sm:$0xff]
    %v574 = vld [vmem:[#allocation8 + $0x68] sm:$0xff]
    %v575 = vld [vmem:[#allocation8 + $0x70] sm:$0xff]
    %v576 = vld [vmem:[#allocation8 + $0x78] sm:$0xff]
    %v577 = vld [vmem:[#allocation8 + $0x80] sm:$0xff]
    %v578 = vld [vmem:[#allocation8 + $0x88] sm:$0xff]
    %v579 = vld [vmem:[#allocation8 + $0x90] sm:$0xff]
    %v580 = vld [vmem:[#allocation8 + $0x98] sm:$0xff]
    %v581 = vld [vmem:[#allocation8 + $0xa0] sm:$0xff]
    %v582 = vld [vmem:[#allocation8 + $0xa8] sm:$0xff]
    %v583 = vld [vmem:[#allocation8 + $0xb0] sm:$0xff]
    %v584 = vld [vmem:[#allocation8 + $0xb8] sm:$0xff]
    %v585 = vld [vmem:[#allocation8 + $0xc0] sm:$0xff]
    %v586 = vld [vmem:[#allocation8 + $0xc8] sm:$0xff]
    %v587 = vld [vmem:[#allocation8 + $0xd0] sm:$0xff]
    %v588 = vld [vmem:[#allocation8 + $0xd8] sm:$0xff]
    %v589 = vld [vmem:[#allocation8 + $0xe0] sm:$0xff]
    %v590 = vld [vmem:[#allocation8 + $0xe8] sm:$0xff]
    %v591 = vld [vmem:[#allocation8 + $0xf0] sm:$0xff]
    %v592 = vld [vmem:[#allocation8 + $0xf8] sm:$0xff]
    %v593 = vld [vmem:[#allocation8 + $0x100] sm:$0xff]
    %v594 = vld [vmem:[#allocation8 + $0x108] sm:$0xff]
    %v595 = vld [vmem:[#allocation8 + $0x110] sm:$0xff]
    %v596 = vld [vmem:[#allocation8 + $0x118] sm:$0xff]
    %v597 = vld [vmem:[#allocation8 + $0x120] sm:$0xff]
    %v598 = vld [vmem:[#allocation8 + $0x128] sm:$0xff]
    %v599 = vld [vmem:[#allocation8 + $0x130] sm:$0xff]
    %v600 = vld [vmem:[#allocation8 + $0x138] sm:$0xff]
    %v601 = vld [vmem:[#allocation8 + $0x140] sm:$0xff]
    %v602 = vld [vmem:[#allocation8 + $0x148] sm:$0xff]
    %v603 = vld [vmem:[#allocation8 + $0x150] sm:$0xff]
    %v604 = vld [vmem:[#allocation8 + $0x158] sm:$0xff]
    %v605 = vld [vmem:[#allocation8 + $0x160] sm:$0xff]
    %v606 = vld [vmem:[#allocation8 + $0x168] sm:$0xff]
    %v607 = vld [vmem:[#allocation8 + $0x170] sm:$0xff]
    %v608 = vld [vmem:[#allocation8 + $0x178] sm:$0xff]
    %v609 = vld [vmem:[#allocation8 + $0x180] sm:$0xff]
    %v610 = vld [vmem:[#allocation8 + $0x188] sm:$0xff]
    %v611 = vld [vmem:[#allocation8 + $0x190] sm:$0xff]
    %v612 = vld [vmem:[#allocation8 + $0x198] sm:$0xff]
    %v613 = vld [vmem:[#allocation8 + $0x1a0] sm:$0xff]
    %v614 = vld [vmem:[#allocation8 + $0x1a8] sm:$0xff]
    %v615 = vld [vmem:[#allocation8 + $0x1b0] sm:$0xff]
    %v616 = vld [vmem:[#allocation8 + $0x1b8] sm:$0xff]
    %v617 = vld [vmem:[#allocation8 + $0x1c0] sm:$0xff]
    %v618 = vld [vmem:[#allocation8 + $0x1c8] sm:$0xff]
    %v619 = vld [vmem:[#allocation8 + $0x1d0] sm:$0xff]
    %v620 = vld [vmem:[#allocation8 + $0x1d8] sm:$0xff]
    %v621 = vld [vmem:[#allocation8 + $0x1e0] sm:$0xff]
    %v622 = vld [vmem:[#allocation8 + $0x1e8] sm:$0xff]
    %v623 = vld [vmem:[#allocation8 + $0x1f0] sm:$0xff]
    %v624 = vld [vmem:[#allocation8 + $0x1f8] sm:$0xff]
    %v625 = vld [vmem:[#allocation8 + $0x200] sm:$0xff]
    %v626 = vld [vmem:[#allocation8 + $0x208] sm:$0xff]
    %v627 = vld [vmem:[#allocation8 + $0x210] sm:$0xff]
    %v628 = vld [vmem:[#allocation8 + $0x218] sm:$0xff]
    %v629 = vld [vmem:[#allocation8 + $0x220] sm:$0xff]
    %v630 = vld [vmem:[#allocation8 + $0x228] sm:$0xff]
    %v631 = vld [vmem:[#allocation8 + $0x230] sm:$0xff]
    %v632 = vld [vmem:[#allocation8 + $0x238] sm:$0xff]
    %v633 = vld [vmem:[#allocation8 + $0x240] sm:$0xff]
    %v634 = vld [vmem:[#allocation8 + $0x248] sm:$0xff]
    %v635 = vld [vmem:[#allocation8 + $0x250] sm:$0xff]
    %v636 = vld [vmem:[#allocation8 + $0x258] sm:$0xff]
    %v637 = vld [vmem:[#allocation8 + $0x260] sm:$0xff]
    %v638 = vld [vmem:[#allocation8 + $0x268] sm:$0xff]
    %v639 = vld [vmem:[#allocation8 + $0x270] sm:$0xff]
    %v640 = vld [vmem:[#allocation8 + $0x278] sm:$0xff]
    %v641 = vld [vmem:[#allocation8 + $0x280] sm:$0xff]
    %v642 = vld [vmem:[#allocation8 + $0x288] sm:$0xff]
    %v643 = vld [vmem:[#allocation8 + $0x290] sm:$0xff]
    %v644 = vld [vmem:[#allocation8 + $0x298] sm:$0xff]
    %v645 = vld [vmem:[#allocation8 + $0x2a0] sm:$0xff]
    %v646 = vld [vmem:[#allocation8 + $0x2a8] sm:$0xff]
    %v647 = vld [vmem:[#allocation8 + $0x2b0] sm:$0xff]
    %v648 = vld [vmem:[#allocation8 + $0x2b8] sm:$0xff]
    %v649 = vld [vmem:[#allocation8 + $0x2c0] sm:$0xff]
    %v650 = vld [vmem:[#allocation8 + $0x2c8] sm:$0xff]
    %v651 = vld [vmem:[#allocation8 + $0x2d0] sm:$0xff]
    %v652 = vld [vmem:[#allocation8 + $0x2d8] sm:$0xff]
    %v653 = vld [vmem:[#allocation8 + $0x2e0] sm:$0xff]
    %v654 = vld [vmem:[#allocation8 + $0x2e8] sm:$0xff]
    %v655 = vld [vmem:[#allocation8 + $0x2f0] sm:$0xff]
    %v656 = vld [vmem:[#allocation8 + $0x2f8] sm:$0xff]
    %v657 = vld [vmem:[#allocation8 + $0x300] sm:$0xff]
    %v658 = vld [vmem:[#allocation8 + $0x308] sm:$0xff]
    %v659 = vld [vmem:[#allocation8 + $0x310] sm:$0xff]
    %v660 = vld [vmem:[#allocation8 + $0x318] sm:$0xff]
    %v661 = vld [vmem:[#allocation8 + $0x320] sm:$0xff]
    %v662 = vld [vmem:[#allocation8 + $0x328] sm:$0xff]
    %v663 = vld [vmem:[#allocation8 + $0x330] sm:$0xff]
    %v664 = vld [vmem:[#allocation8 + $0x338] sm:$0xff]
    %v665 = vld [vmem:[#allocation8 + $0x340] sm:$0xff]
    %v666 = vld [vmem:[#allocation8 + $0x348] sm:$0xff]
    %v667 = vld [vmem:[#allocation8 + $0x350] sm:$0xff]
    %v668 = vld [vmem:[#allocation8 + $0x358] sm:$0xff]
    %v669 = vld [vmem:[#allocation8 + $0x360] sm:$0xff]
    %v670 = vld [vmem:[#allocation8 + $0x368] sm:$0xff]
    %v671 = vld [vmem:[#allocation8 + $0x370] sm:$0xff]
    %v672 = vld [vmem:[#allocation8 + $0x378] sm:$0xff]
    %v673 = vld [vmem:[#allocation8 + $0x380] sm:$0xff]
    %v674 = vld [vmem:[#allocation8 + $0x388] sm:$0xff]
    %v675 = vld [vmem:[#allocation8 + $0x390] sm:$0xff]
    %v676 = vld [vmem:[#allocation8 + $0x398] sm:$0xff]
    %v677 = vld [vmem:[#allocation8 + $0x3a0] sm:$0xff]
    %v678 = vld [vmem:[#allocation8 + $0x3a8] sm:$0xff]
    %v679 = vld [vmem:[#allocation8 + $0x3b0] sm:$0xff]
    %v680 = vld [vmem:[#allocation8 + $0x3b8] sm:$0xff]
    %v681 = vld [vmem:[#allocation8 + $0x3c0] sm:$0xff]
    %v682 = vld [vmem:[#allocation8 + $0x3c8] sm:$0xff]
    %v683 = vld [vmem:[#allocation8 + $0x3d0] sm:$0xff]
    %v684 = vld [vmem:[#allocation8 + $0x3d8] sm:$0xff]
    %v685 = vld [vmem:[#allocation8 + $0x3e0] sm:$0xff]
    %v686 = vld [vmem:[#allocation8 + $0x3e8] sm:$0xff]
    %v687 = vld [vmem:[#allocation8 + $0x3f0] sm:$0xff]
    %v688 = vld [vmem:[#allocation8 + $0x3f8] sm:$0xff]
    %v689 = vld [vmem:[#allocation8 + $0x400] sm:$0xff]
    %v690 = vld [vmem:[#allocation8 + $0x408] sm:$0xff]
    %v691 = vld [vmem:[#allocation8 + $0x410] sm:$0xff]
    %v692 = vld [vmem:[#allocation8 + $0x418] sm:$0xff]
    %v693 = vld [vmem:[#allocation8 + $0x420] sm:$0xff]
    %v694 = vld [vmem:[#allocation8 + $0x428] sm:$0xff]
    %v695 = vld [vmem:[#allocation8 + $0x430] sm:$0xff]
    %v696 = vld [vmem:[#allocation8 + $0x438] sm:$0xff]
    %v697 = vld [vmem:[#allocation8 + $0x440] sm:$0xff]
    %v698 = vld [vmem:[#allocation8 + $0x448] sm:$0xff]
    %v699 = vld [vmem:[#allocation8 + $0x450] sm:$0xff]
    %v700 = vld [vmem:[#allocation8 + $0x458] sm:$0xff]
    %v701 = vld [vmem:[#allocation8 + $0x460] sm:$0xff]
    %v702 = vld [vmem:[#allocation8 + $0x468] sm:$0xff]
    %v703 = vld [vmem:[#allocation8 + $0x470] sm:$0xff]
    %v704 = vld [vmem:[#allocation8 + $0x478] sm:$0xff]
    %v705 = vld [vmem:[#allocation8 + $0x480] sm:$0xff]
    %v706 = vld [vmem:[#allocation8 + $0x488] sm:$0xff]
    %v707 = vld [vmem:[#allocation8 + $0x490] sm:$0xff]
    %v708 = vld [vmem:[#allocation8 + $0x498] sm:$0xff]
    %v709 = vld [vmem:[#allocation8 + $0x4a0] sm:$0xff]
    %v710 = vld [vmem:[#allocation8 + $0x4a8] sm:$0xff]
    %v711 = vld [vmem:[#allocation8 + $0x4b0] sm:$0xff]
    %v712 = vld [vmem:[#allocation8 + $0x4b8] sm:$0xff]
    %v713 = vld [vmem:[#allocation8 + $0x4c0] sm:$0xff]
    %v714 = vld [vmem:[#allocation8 + $0x4c8] sm:$0xff]
    %v715 = vld [vmem:[#allocation8 + $0x4d0] sm:$0xff]
    %v716 = vld [vmem:[#allocation8 + $0x4d8] sm:$0xff]
    %v717 = vld [vmem:[#allocation8 + $0x4e0] sm:$0xff]
    %v718 = vld [vmem:[#allocation8 + $0x4e8] sm:$0xff]
    %v719 = vld [vmem:[#allocation8 + $0x4f0] sm:$0xff]
    %v720 = vld [vmem:[#allocation8 + $0x4f8] sm:$0xff]
    %v721 = vld [vmem:[#allocation8 + $0x500] sm:$0xff]
    %v722 = vld [vmem:[#allocation8 + $0x508] sm:$0xff]
    %v723 = vld [vmem:[#allocation8 + $0x510] sm:$0xff]
    %v724 = vld [vmem:[#allocation8 + $0x518] sm:$0xff]
    %v725 = vld [vmem:[#allocation8 + $0x520] sm:$0xff]
    %v726 = vld [vmem:[#allocation8 + $0x528] sm:$0xff]
    %v727 = vld [vmem:[#allocation8 + $0x530] sm:$0xff]
    %v728 = vld [vmem:[#allocation8 + $0x538] sm:$0xff]
    %v729 = vld [vmem:[#allocation8 + $0x540] sm:$0xff]
    %v730 = vld [vmem:[#allocation8 + $0x548] sm:$0xff]
    %v731 = vld [vmem:[#allocation8 + $0x550] sm:$0xff]
    %v732 = vld [vmem:[#allocation8 + $0x558] sm:$0xff]
    %v733 = vld [vmem:[#allocation8 + $0x560] sm:$0xff]
    %v734 = vld [vmem:[#allocation8 + $0x568] sm:$0xff]
    %v735 = vld [vmem:[#allocation8 + $0x570] sm:$0xff]
    %v736 = vld [vmem:[#allocation8 + $0x578] sm:$0xff]
    %v737 = vld [vmem:[#allocation8 + $0x580] sm:$0xff]
    %v738 = vld [vmem:[#allocation8 + $0x588] sm:$0xff]
    %v739 = vld [vmem:[#allocation8 + $0x590] sm:$0xff]
    %v740 = vld [vmem:[#allocation8 + $0x598] sm:$0xff]
    %v741 = vld [vmem:[#allocation8 + $0x5a0] sm:$0xff]
    %v742 = vld [vmem:[#allocation8 + $0x5a8] sm:$0xff]
    %v743 = vld [vmem:[#allocation8 + $0x5b0] sm:$0xff]
    %v744 = vld [vmem:[#allocation8 + $0x5b8] sm:$0xff]
    %v745 = vld [vmem:[#allocation8 + $0x5c0] sm:$0xff]
    %v746 = vld [vmem:[#allocation8 + $0x5c8] sm:$0xff]
    %v747 = vld [vmem:[#allocation8 + $0x5d0] sm:$0xff]
    %v748 = vld [vmem:[#allocation8 + $0x5d8] sm:$0xff]
    %v749 = vld [vmem:[#allocation8 + $0x5e0] sm:$0xff]
    %v750 = vld [vmem:[#allocation8 + $0x5e8] sm:$0xff]
    %v751 = vld [vmem:[#allocation8 + $0x5f0] sm:$0xff]
    %v752 = vld [vmem:[#allocation8 + $0x5f8] sm:$0xff]
    %v753 = vld [vmem:[#allocation8 + $0x600] sm:$0xff]
    %v754 = vld [vmem:[#allocation8 + $0x608] sm:$0xff]
    %v755 = vld [vmem:[#allocation8 + $0x610] sm:$0xff]
    %v756 = vld [vmem:[#allocation8 + $0x618] sm:$0xff]
    %v757 = vld [vmem:[#allocation8 + $0x620] sm:$0xff]
    %v758 = vld [vmem:[#allocation8 + $0x628] sm:$0xff]
    %v759 = vld [vmem:[#allocation8 + $0x630] sm:$0xff]
    %v760 = vld [vmem:[#allocation8 + $0x638] sm:$0xff]
    %v761 = vld [vmem:[#allocation8 + $0x640] sm:$0xff]
    %v762 = vld [vmem:[#allocation8 + $0x648] sm:$0xff]
    %v763 = vld [vmem:[#allocation8 + $0x650] sm:$0xff]
    %v764 = vld [vmem:[#allocation8 + $0x658] sm:$0xff]
    %v765 = vld [vmem:[#allocation8 + $0x660] sm:$0xff]
    %v766 = vld [vmem:[#allocation8 + $0x668] sm:$0xff]
    %v767 = vld [vmem:[#allocation8 + $0x670] sm:$0xff]
    %v768 = vld [vmem:[#allocation8 + $0x678] sm:$0xff]
    %v769 = vld [vmem:[#allocation8 + $0x680] sm:$0xff]
    %v770 = vld [vmem:[#allocation8 + $0x688] sm:$0xff]
    %v771 = vld [vmem:[#allocation8 + $0x690] sm:$0xff]
    %v772 = vld [vmem:[#allocation8 + $0x698] sm:$0xff]
    %v773 = vld [vmem:[#allocation8 + $0x6a0] sm:$0xff]
    %v774 = vld [vmem:[#allocation8 + $0x6a8] sm:$0xff]
    %v775 = vld [vmem:[#allocation8 + $0x6b0] sm:$0xff]
    %v776 = vld [vmem:[#allocation8 + $0x6b8] sm:$0xff]
    %v777 = vld [vmem:[#allocation8 + $0x6c0] sm:$0xff]
    %v778 = vld [vmem:[#allocation8 + $0x6c8] sm:$0xff]
    %v779 = vld [vmem:[#allocation8 + $0x6d0] sm:$0xff]
    %v780 = vld [vmem:[#allocation8 + $0x6d8] sm:$0xff]
    %v781 = vld [vmem:[#allocation8 + $0x6e0] sm:$0xff]
    %v782 = vld [vmem:[#allocation8 + $0x6e8] sm:$0xff]
    %v783 = vld [vmem:[#allocation8 + $0x6f0] sm:$0xff]
    %v784 = vld [vmem:[#allocation8 + $0x6f8] sm:$0xff]
    %v785 = vld [vmem:[#allocation8 + $0x700] sm:$0xff]
    %v786 = vld [vmem:[#allocation8 + $0x708] sm:$0xff]
    %v787 = vld [vmem:[#allocation8 + $0x710] sm:$0xff]
    %v788 = vld [vmem:[#allocation8 + $0x718] sm:$0xff]
    %v789 = vld [vmem:[#allocation8 + $0x720] sm:$0xff]
    %v790 = vld [vmem:[#allocation8 + $0x728] sm:$0xff]
    %v791 = vld [vmem:[#allocation8 + $0x730] sm:$0xff]
    %v792 = vld [vmem:[#allocation8 + $0x738] sm:$0xff]
    %v793 = vld [vmem:[#allocation8 + $0x740] sm:$0xff]
    %v794 = vld [vmem:[#allocation8 + $0x748] sm:$0xff]
    %v795 = vld [vmem:[#allocation8 + $0x750] sm:$0xff]
    %v796 = vld [vmem:[#allocation8 + $0x758] sm:$0xff]
    %v797 = vld [vmem:[#allocation8 + $0x760] sm:$0xff]
    %v798 = vld [vmem:[#allocation8 + $0x768] sm:$0xff]
    %v799 = vld [vmem:[#allocation8 + $0x770] sm:$0xff]
    %v800 = vld [vmem:[#allocation8 + $0x778] sm:$0xff]
    %v801 = vld [vmem:[#allocation8 + $0x780] sm:$0xff]
    %v802 = vld [vmem:[#allocation8 + $0x788] sm:$0xff]
    %v803 = vld [vmem:[#allocation8 + $0x790] sm:$0xff]
    %v804 = vld [vmem:[#allocation8 + $0x798] sm:$0xff]
    %v805 = vld [vmem:[#allocation8 + $0x7a0] sm:$0xff]
    %v806 = vld [vmem:[#allocation8 + $0x7a8] sm:$0xff]
    %v807 = vld [vmem:[#allocation8 + $0x7b0] sm:$0xff]
    %v808 = vld [vmem:[#allocation8 + $0x7b8] sm:$0xff]
    %v809 = vld [vmem:[#allocation8 + $0x7c0] sm:$0xff]
    %v810 = vld [vmem:[#allocation8 + $0x7c8] sm:$0xff]
    %v811 = vld [vmem:[#allocation8 + $0x7d0] sm:$0xff]
    %v812 = vld [vmem:[#allocation8 + $0x7d8] sm:$0xff]
    %v813 = vld [vmem:[#allocation8 + $0x7e0] sm:$0xff]
    %v814 = vld [vmem:[#allocation8 + $0x7e8] sm:$0xff]
    %v815 = vld [vmem:[#allocation8 + $0x7f0] sm:$0xff]
    %v816 = vld [vmem:[#allocation8 + $0x7f8] sm:$0xff]
    %v817 = vld [vmem:[#allocation8 + $0x800] sm:$0xff]
    %v818 = vld [vmem:[#allocation8 + $0x808] sm:$0xff]
    %v819 = vld [vmem:[#allocation8 + $0x810] sm:$0xff]
    %v820 = vld [vmem:[#allocation8 + $0x818] sm:$0xff]
    %v821 = vld [vmem:[#allocation8 + $0x820] sm:$0xff]
    %v822 = vld [vmem:[#allocation8 + $0x828] sm:$0xff]
    %v823 = vld [vmem:[#allocation8 + $0x830] sm:$0xff]
    %v824 = vld [vmem:[#allocation8 + $0x838] sm:$0xff]
    %v825 = vld [vmem:[#allocation8 + $0x840] sm:$0xff]
    %v826 = vld [vmem:[#allocation8 + $0x848] sm:$0xff]
    %v827 = vld [vmem:[#allocation8 + $0x850] sm:$0xff]
    %v828 = vld [vmem:[#allocation8 + $0x858] sm:$0xff]
    %v829 = vld [vmem:[#allocation8 + $0x860] sm:$0xff]
    %v830 = vld [vmem:[#allocation8 + $0x868] sm:$0xff]
    %v831 = vld [vmem:[#allocation8 + $0x870] sm:$0xff]
    %v832 = vld [vmem:[#allocation8 + $0x878] sm:$0xff]
    %v833 = vld [vmem:[#allocation8 + $0x880] sm:$0xff]
    %v834 = vld [vmem:[#allocation8 + $0x888] sm:$0xff]
    %v835 = vld [vmem:[#allocation8 + $0x890] sm:$0xff]
    %v836 = vld [vmem:[#allocation8 + $0x898] sm:$0xff]
    %v837 = vld [vmem:[#allocation8 + $0x8a0] sm:$0xff]
    %v838 = vld [vmem:[#allocation8 + $0x8a8] sm:$0xff]
    %v839 = vld [vmem:[#allocation8 + $0x8b0] sm:$0xff]
    %v840 = vld [vmem:[#allocation8 + $0x8b8] sm:$0xff]
    %v841 = vld [vmem:[#allocation8 + $0x8c0] sm:$0xff]
    %v842 = vld [vmem:[#allocation8 + $0x8c8] sm:$0xff]
    %v843 = vld [vmem:[#allocation8 + $0x8d0] sm:$0xff]
    %v844 = vld [vmem:[#allocation8 + $0x8d8] sm:$0xff]
    %v845 = vld [vmem:[#allocation8 + $0x8e0] sm:$0xff]
    %v846 = vld [vmem:[#allocation8 + $0x8e8] sm:$0xff]
    %v847 = vld [vmem:[#allocation8 + $0x8f0] sm:$0xff]
    %v848 = vld [vmem:[#allocation8 + $0x8f8] sm:$0xff]
    %v849 = vld [vmem:[#allocation10] sm:$0x3f]
    %v851 = vlaneseq
    %v852 = vshrl.u32 %v851, 7
    %v853 = vsub.s32 0, %v852
    %v854 = vrot.slane %v849, %v853
    %v855 = vlaneseq
    %v856 = vshrl.u32 %v855, 7
    %v857 = vsub.s32 1, %v856
    %v858 = vrot.slane %v849, %v857
    %v859 = vlaneseq
    %v860 = vshrl.u32 %v859, 7
    %v861 = vsub.s32 2, %v860
    %v862 = vrot.slane %v849, %v861
    %v863 = vlaneseq
    %v864 = vshrl.u32 %v863, 7
    %v865 = vsub.s32 3, %v864
    %v866 = vrot.slane %v849, %v865
    %v867 = vlaneseq
    %v868 = vshrl.u32 %v867, 7
    %v869 = vsub.s32 4, %v868
    %v870 = vrot.slane %v849, %v869
    %v871 = vlaneseq
    %v872 = vshrl.u32 %v871, 7
    %v873 = vsub.s32 5, %v872
    %v874 = vrot.slane %v849, %v873
    %v1169 = vunpack.c.l.b16 %v561
    %v1170 = vunpack.c.h.b16 %v561
    %v1171 = vunpack.c.l.b16 %v562
    %v1172 = vunpack.c.h.b16 %v562
    %v1173 = vunpack.c.l.b16 %v563
    %v1174 = vunpack.c.h.b16 %v563
    %v1175 = vunpack.c.l.b16 %v564
    %v1176 = vunpack.c.h.b16 %v564
    %v1177 = vunpack.c.l.b16 %v565
    %v1178 = vunpack.c.h.b16 %v565
    %v1179 = vunpack.c.l.b16 %v566
    %v1180 = vunpack.c.h.b16 %v566
    %v1181 = vunpack.c.l.b16 %v567
    %v1182 = vunpack.c.h.b16 %v567
    %v1183 = vunpack.c.l.b16 %v568
    %v1184 = vunpack.c.h.b16 %v568
    %v1185 = vunpack.c.l.b16 %v569
    %v1186 = vunpack.c.h.b16 %v569
    %v1187 = vunpack.c.l.b16 %v570
    %v1188 = vunpack.c.h.b16 %v570
    %v1189 = vunpack.c.l.b16 %v571
    %v1190 = vunpack.c.h.b16 %v571
    %v1191 = vunpack.c.l.b16 %v572
    %v1192 = vunpack.c.h.b16 %v572
    %v1193 = vunpack.c.l.b16 %v573
    %v1194 = vunpack.c.h.b16 %v573
    %v1195 = vunpack.c.l.b16 %v574
    %v1196 = vunpack.c.h.b16 %v574
    %v1197 = vunpack.c.l.b16 %v575
    %v1198 = vunpack.c.h.b16 %v575
    %v1199 = vunpack.c.l.b16 %v576
    %v1200 = vunpack.c.h.b16 %v576
    %v1201 = vunpack.c.l.b16 %v577
    %v1202 = vunpack.c.h.b16 %v577
    %v1203 = vunpack.c.l.b16 %v578
    %v1204 = vunpack.c.h.b16 %v578
    %v1205 = vunpack.c.l.b16 %v579
    %v1206 = vunpack.c.h.b16 %v579
    %v1207 = vunpack.c.l.b16 %v580
    %v1208 = vunpack.c.h.b16 %v580
    %v1209 = vunpack.c.l.b16 %v581
    %v1210 = vunpack.c.h.b16 %v581
    %v1211 = vunpack.c.l.b16 %v582
    %v1212 = vunpack.c.h.b16 %v582
    %v1213 = vunpack.c.l.b16 %v583
    %v1214 = vunpack.c.h.b16 %v583
    %v1215 = vunpack.c.l.b16 %v584
    %v1216 = vunpack.c.h.b16 %v584
    %v1217 = vunpack.c.l.b16 %v585
    %v1218 = vunpack.c.h.b16 %v585
    %v1219 = vunpack.c.l.b16 %v586
    %v1220 = vunpack.c.h.b16 %v586
    %v1221 = vunpack.c.l.b16 %v587
    %v1222 = vunpack.c.h.b16 %v587
    %v1223 = vunpack.c.l.b16 %v588
    %v1224 = vunpack.c.h.b16 %v588
    %v1225 = vunpack.c.l.b16 %v589
    %v1226 = vunpack.c.h.b16 %v589
    %v1227 = vunpack.c.l.b16 %v590
    %v1228 = vunpack.c.h.b16 %v590
    %v1229 = vunpack.c.l.b16 %v591
    %v1230 = vunpack.c.h.b16 %v591
    %v1231 = vunpack.c.l.b16 %v592
    %v1232 = vunpack.c.h.b16 %v592
    %v1233 = vunpack.c.l.b16 %v593
    %v1234 = vunpack.c.h.b16 %v593
    %v1235 = vunpack.c.l.b16 %v594
    %v1236 = vunpack.c.h.b16 %v594
    %v1237 = vunpack.c.l.b16 %v595
    %v1238 = vunpack.c.h.b16 %v595
    %v1239 = vunpack.c.l.b16 %v596
    %v1240 = vunpack.c.h.b16 %v596
    %v1241 = vunpack.c.l.b16 %v597
    %v1242 = vunpack.c.h.b16 %v597
    %v1243 = vunpack.c.l.b16 %v598
    %v1244 = vunpack.c.h.b16 %v598
    %v1245 = vunpack.c.l.b16 %v599
    %v1246 = vunpack.c.h.b16 %v599
    %v1247 = vunpack.c.l.b16 %v600
    %v1248 = vunpack.c.h.b16 %v600
    %v1249 = vunpack.c.l.b16 %v601
    %v1250 = vunpack.c.h.b16 %v601
    %v1251 = vunpack.c.l.b16 %v602
    %v1252 = vunpack.c.h.b16 %v602
    %v1253 = vunpack.c.l.b16 %v603
    %v1254 = vunpack.c.h.b16 %v603
    %v1255 = vunpack.c.l.b16 %v604
    %v1256 = vunpack.c.h.b16 %v604
    %v1257 = vunpack.c.l.b16 %v605
    %v1258 = vunpack.c.h.b16 %v605
    %v1259 = vunpack.c.l.b16 %v606
    %v1260 = vunpack.c.h.b16 %v606
    %v1261 = vunpack.c.l.b16 %v607
    %v1262 = vunpack.c.h.b16 %v607
    %v1263 = vunpack.c.l.b16 %v608
    %v1264 = vunpack.c.h.b16 %v608
    %v1265 = vunpack.c.l.b16 %v609
    %v1266 = vunpack.c.h.b16 %v609
    %v1267 = vunpack.c.l.b16 %v610
    %v1268 = vunpack.c.h.b16 %v610
    %v1269 = vunpack.c.l.b16 %v611
    %v1270 = vunpack.c.h.b16 %v611
    %v1271 = vunpack.c.l.b16 %v612
    %v1272 = vunpack.c.h.b16 %v612
    %v1273 = vunpack.c.l.b16 %v613
    %v1274 = vunpack.c.h.b16 %v613
    %v1275 = vunpack.c.l.b16 %v614
    %v1276 = vunpack.c.h.b16 %v614
    %v1277 = vunpack.c.l.b16 %v615
    %v1278 = vunpack.c.h.b16 %v615
    %v1279 = vunpack.c.l.b16 %v616
    %v1280 = vunpack.c.h.b16 %v616
    %v1281 = vunpack.c.l.b16 %v617
    %v1282 = vunpack.c.h.b16 %v617
    %v1283 = vunpack.c.l.b16 %v618
    %v1284 = vunpack.c.h.b16 %v618
    %v1285 = vunpack.c.l.b16 %v619
    %v1286 = vunpack.c.h.b16 %v619
    %v1287 = vunpack.c.l.b16 %v620
    %v1288 = vunpack.c.h.b16 %v620
    %v1289 = vunpack.c.l.b16 %v621
    %v1290 = vunpack.c.h.b16 %v621
    %v1291 = vunpack.c.l.b16 %v622
    %v1292 = vunpack.c.h.b16 %v622
    %v1293 = vunpack.c.l.b16 %v623
    %v1294 = vunpack.c.h.b16 %v623
    %v1295 = vunpack.c.l.b16 %v624
    %v1296 = vunpack.c.h.b16 %v624
    %v1297 = vunpack.c.l.b16 %v625
    %v1298 = vunpack.c.h.b16 %v625
    %v1299 = vunpack.c.l.b16 %v626
    %v1300 = vunpack.c.h.b16 %v626
    %v1301 = vunpack.c.l.b16 %v627
    %v1302 = vunpack.c.h.b16 %v627
    %v1303 = vunpack.c.l.b16 %v628
    %v1304 = vunpack.c.h.b16 %v628
    %v1305 = vunpack.c.l.b16 %v629
    %v1306 = vunpack.c.h.b16 %v629
    %v1307 = vunpack.c.l.b16 %v630
    %v1308 = vunpack.c.h.b16 %v630
    %v1309 = vunpack.c.l.b16 %v631
    %v1310 = vunpack.c.h.b16 %v631
    %v1311 = vunpack.c.l.b16 %v632
    %v1312 = vunpack.c.h.b16 %v632
    %v1313 = vunpack.c.l.b16 %v633
    %v1314 = vunpack.c.h.b16 %v633
    %v1315 = vunpack.c.l.b16 %v634
    %v1316 = vunpack.c.h.b16 %v634
    %v1317 = vunpack.c.l.b16 %v635
    %v1318 = vunpack.c.h.b16 %v635
    %v1319 = vunpack.c.l.b16 %v636
    %v1320 = vunpack.c.h.b16 %v636
    %v1321 = vunpack.c.l.b16 %v637
    %v1322 = vunpack.c.h.b16 %v637
    %v1323 = vunpack.c.l.b16 %v638
    %v1324 = vunpack.c.h.b16 %v638
    %v1325 = vunpack.c.l.b16 %v639
    %v1326 = vunpack.c.h.b16 %v639
    %v1327 = vunpack.c.l.b16 %v640
    %v1328 = vunpack.c.h.b16 %v640
    %v1329 = vunpack.c.l.b16 %v641
    %v1330 = vunpack.c.h.b16 %v641
    %v1331 = vunpack.c.l.b16 %v642
    %v1332 = vunpack.c.h.b16 %v642
    %v1333 = vunpack.c.l.b16 %v643
    %v1334 = vunpack.c.h.b16 %v643
    %v1335 = vunpack.c.l.b16 %v644
    %v1336 = vunpack.c.h.b16 %v644
    %v1337 = vunpack.c.l.b16 %v645
    %v1338 = vunpack.c.h.b16 %v645
    %v1339 = vunpack.c.l.b16 %v646
    %v1340 = vunpack.c.h.b16 %v646
    %v1341 = vunpack.c.l.b16 %v647
    %v1342 = vunpack.c.h.b16 %v647
    %v1343 = vunpack.c.l.b16 %v648
    %v1344 = vunpack.c.h.b16 %v648
    %v1345 = vunpack.c.l.b16 %v649
    %v1346 = vunpack.c.h.b16 %v649
    %v1347 = vunpack.c.l.b16 %v650
    %v1348 = vunpack.c.h.b16 %v650
    %v1349 = vunpack.c.l.b16 %v651
    %v1350 = vunpack.c.h.b16 %v651
    %v1351 = vunpack.c.l.b16 %v652
    %v1352 = vunpack.c.h.b16 %v652
    %v1353 = vunpack.c.l.b16 %v653
    %v1354 = vunpack.c.h.b16 %v653
    %v1355 = vunpack.c.l.b16 %v654
    %v1356 = vunpack.c.h.b16 %v654
    %v1357 = vunpack.c.l.b16 %v655
    %v1358 = vunpack.c.h.b16 %v655
    %v1359 = vunpack.c.l.b16 %v656
    %v1360 = vunpack.c.h.b16 %v656
    %v1361 = vunpack.c.l.b16 %v657
    %v1362 = vunpack.c.h.b16 %v657
    %v1363 = vunpack.c.l.b16 %v658
    %v1364 = vunpack.c.h.b16 %v658
    %v1365 = vunpack.c.l.b16 %v659
    %v1366 = vunpack.c.h.b16 %v659
    %v1367 = vunpack.c.l.b16 %v660
    %v1368 = vunpack.c.h.b16 %v660
    %v1369 = vunpack.c.l.b16 %v661
    %v1370 = vunpack.c.h.b16 %v661
    %v1371 = vunpack.c.l.b16 %v662
    %v1372 = vunpack.c.h.b16 %v662
    %v1373 = vunpack.c.l.b16 %v663
    %v1374 = vunpack.c.h.b16 %v663
    %v1375 = vunpack.c.l.b16 %v664
    %v1376 = vunpack.c.h.b16 %v664
    %v1377 = vunpack.c.l.b16 %v665
    %v1378 = vunpack.c.h.b16 %v665
    %v1379 = vunpack.c.l.b16 %v666
    %v1380 = vunpack.c.h.b16 %v666
    %v1381 = vunpack.c.l.b16 %v667
    %v1382 = vunpack.c.h.b16 %v667
    %v1383 = vunpack.c.l.b16 %v668
    %v1384 = vunpack.c.h.b16 %v668
    %v1385 = vunpack.c.l.b16 %v669
    %v1386 = vunpack.c.h.b16 %v669
    %v1387 = vunpack.c.l.b16 %v670
    %v1388 = vunpack.c.h.b16 %v670
    %v1389 = vunpack.c.l.b16 %v671
    %v1390 = vunpack.c.h.b16 %v671
    %v1391 = vunpack.c.l.b16 %v672
    %v1392 = vunpack.c.h.b16 %v672
    %v1393 = vunpack.c.l.b16 %v673
    %v1394 = vunpack.c.h.b16 %v673
    %v1395 = vunpack.c.l.b16 %v674
    %v1396 = vunpack.c.h.b16 %v674
    %v1397 = vunpack.c.l.b16 %v675
    %v1398 = vunpack.c.h.b16 %v675
    %v1399 = vunpack.c.l.b16 %v676
    %v1400 = vunpack.c.h.b16 %v676
    %v1401 = vunpack.c.l.b16 %v677
    %v1402 = vunpack.c.h.b16 %v677
    %v1403 = vunpack.c.l.b16 %v678
    %v1404 = vunpack.c.h.b16 %v678
    %v1405 = vunpack.c.l.b16 %v679
    %v1406 = vunpack.c.h.b16 %v679
    %v1407 = vunpack.c.l.b16 %v680
    %v1408 = vunpack.c.h.b16 %v680
    %v1409 = vunpack.c.l.b16 %v681
    %v1410 = vunpack.c.h.b16 %v681
    %v1411 = vunpack.c.l.b16 %v682
    %v1412 = vunpack.c.h.b16 %v682
    %v1413 = vunpack.c.l.b16 %v683
    %v1414 = vunpack.c.h.b16 %v683
    %v1415 = vunpack.c.l.b16 %v684
    %v1416 = vunpack.c.h.b16 %v684
    %v1417 = vunpack.c.l.b16 %v685
    %v1418 = vunpack.c.h.b16 %v685
    %v1419 = vunpack.c.l.b16 %v686
    %v1420 = vunpack.c.h.b16 %v686
    %v1421 = vunpack.c.l.b16 %v687
    %v1422 = vunpack.c.h.b16 %v687
    %v1423 = vunpack.c.l.b16 %v688
    %v1424 = vunpack.c.h.b16 %v688
    %v1425 = vunpack.c.l.b16 %v689
    %v1426 = vunpack.c.h.b16 %v689
    %v1427 = vunpack.c.l.b16 %v690
    %v1428 = vunpack.c.h.b16 %v690
    %v1429 = vunpack.c.l.b16 %v691
    %v1430 = vunpack.c.h.b16 %v691
    %v1431 = vunpack.c.l.b16 %v692
    %v1432 = vunpack.c.h.b16 %v692
    %v1433 = vunpack.c.l.b16 %v693
    %v1434 = vunpack.c.h.b16 %v693
    %v1435 = vunpack.c.l.b16 %v694
    %v1436 = vunpack.c.h.b16 %v694
    %v1437 = vunpack.c.l.b16 %v695
    %v1438 = vunpack.c.h.b16 %v695
    %v1439 = vunpack.c.l.b16 %v696
    %v1440 = vunpack.c.h.b16 %v696
    %v1441 = vunpack.c.l.b16 %v697
    %v1442 = vunpack.c.h.b16 %v697
    %v1443 = vunpack.c.l.b16 %v698
    %v1444 = vunpack.c.h.b16 %v698
    %v1445 = vunpack.c.l.b16 %v699
    %v1446 = vunpack.c.h.b16 %v699
    %v1447 = vunpack.c.l.b16 %v700
    %v1448 = vunpack.c.h.b16 %v700
    %v1449 = vunpack.c.l.b16 %v701
    %v1450 = vunpack.c.h.b16 %v701
    %v1451 = vunpack.c.l.b16 %v702
    %v1452 = vunpack.c.h.b16 %v702
    %v1453 = vunpack.c.l.b16 %v703
    %v1454 = vunpack.c.h.b16 %v703
    %v1455 = vunpack.c.l.b16 %v704
    %v1456 = vunpack.c.h.b16 %v704
    %v1457 = vunpack.c.l.b16 %v705
    %v1458 = vunpack.c.h.b16 %v705
    %v1459 = vunpack.c.l.b16 %v706
    %v1460 = vunpack.c.h.b16 %v706
    %v1461 = vunpack.c.l.b16 %v707
    %v1462 = vunpack.c.h.b16 %v707
    %v1463 = vunpack.c.l.b16 %v708
    %v1464 = vunpack.c.h.b16 %v708
    %v1465 = vunpack.c.l.b16 %v709
    %v1466 = vunpack.c.h.b16 %v709
    %v1467 = vunpack.c.l.b16 %v710
    %v1468 = vunpack.c.h.b16 %v710
    %v1469 = vunpack.c.l.b16 %v711
    %v1470 = vunpack.c.h.b16 %v711
    %v1471 = vunpack.c.l.b16 %v712
    %v1472 = vunpack.c.h.b16 %v712
    %v1473 = vunpack.c.l.b16 %v713
    %v1474 = vunpack.c.h.b16 %v713
    %v1475 = vunpack.c.l.b16 %v714
    %v1476 = vunpack.c.h.b16 %v714
    %v1477 = vunpack.c.l.b16 %v715
    %v1478 = vunpack.c.h.b16 %v715
    %v1479 = vunpack.c.l.b16 %v716
    %v1480 = vunpack.c.h.b16 %v716
    %v1481 = vunpack.c.l.b16 %v717
    %v1482 = vunpack.c.h.b16 %v717
    %v1483 = vunpack.c.l.b16 %v718
    %v1484 = vunpack.c.h.b16 %v718
    %v1485 = vunpack.c.l.b16 %v719
    %v1486 = vunpack.c.h.b16 %v719
    %v1487 = vunpack.c.l.b16 %v720
    %v1488 = vunpack.c.h.b16 %v720
    %v1489 = vunpack.c.l.b16 %v721
    %v1490 = vunpack.c.h.b16 %v721
    %v1491 = vunpack.c.l.b16 %v722
    %v1492 = vunpack.c.h.b16 %v722
    %v1493 = vunpack.c.l.b16 %v723
    %v1494 = vunpack.c.h.b16 %v723
    %v1495 = vunpack.c.l.b16 %v724
    %v1496 = vunpack.c.h.b16 %v724
    %v1497 = vunpack.c.l.b16 %v725
    %v1498 = vunpack.c.h.b16 %v725
    %v1499 = vunpack.c.l.b16 %v726
    %v1500 = vunpack.c.h.b16 %v726
    %v1501 = vunpack.c.l.b16 %v727
    %v1502 = vunpack.c.h.b16 %v727
    %v1503 = vunpack.c.l.b16 %v728
    %v1504 = vunpack.c.h.b16 %v728
    %v1505 = vunpack.c.l.b16 %v729
    %v1506 = vunpack.c.h.b16 %v729
    %v1507 = vunpack.c.l.b16 %v730
    %v1508 = vunpack.c.h.b16 %v730
    %v1509 = vunpack.c.l.b16 %v731
    %v1510 = vunpack.c.h.b16 %v731
    %v1511 = vunpack.c.l.b16 %v732
    %v1512 = vunpack.c.h.b16 %v732
    %v1513 = vunpack.c.l.b16 %v733
    %v1514 = vunpack.c.h.b16 %v733
    %v1515 = vunpack.c.l.b16 %v734
    %v1516 = vunpack.c.h.b16 %v734
    %v1517 = vunpack.c.l.b16 %v735
    %v1518 = vunpack.c.h.b16 %v735
    %v1519 = vunpack.c.l.b16 %v736
    %v1520 = vunpack.c.h.b16 %v736
    %v1521 = vunpack.c.l.b16 %v737
    %v1522 = vunpack.c.h.b16 %v737
    %v1523 = vunpack.c.l.b16 %v738
    %v1524 = vunpack.c.h.b16 %v738
    %v1525 = vunpack.c.l.b16 %v739
    %v1526 = vunpack.c.h.b16 %v739
    %v1527 = vunpack.c.l.b16 %v740
    %v1528 = vunpack.c.h.b16 %v740
    %v1529 = vunpack.c.l.b16 %v741
    %v1530 = vunpack.c.h.b16 %v741
    %v1531 = vunpack.c.l.b16 %v742
    %v1532 = vunpack.c.h.b16 %v742
    %v1533 = vunpack.c.l.b16 %v743
    %v1534 = vunpack.c.h.b16 %v743
    %v1535 = vunpack.c.l.b16 %v744
    %v1536 = vunpack.c.h.b16 %v744
    %v1537 = vunpack.c.l.b16 %v745
    %v1538 = vunpack.c.h.b16 %v745
    %v1539 = vunpack.c.l.b16 %v746
    %v1540 = vunpack.c.h.b16 %v746
    %v1541 = vunpack.c.l.b16 %v747
    %v1542 = vunpack.c.h.b16 %v747
    %v1543 = vunpack.c.l.b16 %v748
    %v1544 = vunpack.c.h.b16 %v748
    %v1545 = vunpack.c.l.b16 %v749
    %v1546 = vunpack.c.h.b16 %v749
    %v1547 = vunpack.c.l.b16 %v750
    %v1548 = vunpack.c.h.b16 %v750
    %v1549 = vunpack.c.l.b16 %v751
    %v1550 = vunpack.c.h.b16 %v751
    %v1551 = vunpack.c.l.b16 %v752
    %v1552 = vunpack.c.h.b16 %v752
    %v1553 = vunpack.c.l.b16 %v753
    %v1554 = vunpack.c.h.b16 %v753
    %v1555 = vunpack.c.l.b16 %v754
    %v1556 = vunpack.c.h.b16 %v754
    %v1557 = vunpack.c.l.b16 %v755
    %v1558 = vunpack.c.h.b16 %v755
    %v1559 = vunpack.c.l.b16 %v756
    %v1560 = vunpack.c.h.b16 %v756
    %v1561 = vunpack.c.l.b16 %v757
    %v1562 = vunpack.c.h.b16 %v757
    %v1563 = vunpack.c.l.b16 %v758
    %v1564 = vunpack.c.h.b16 %v758
    %v1565 = vunpack.c.l.b16 %v759
    %v1566 = vunpack.c.h.b16 %v759
    %v1567 = vunpack.c.l.b16 %v760
    %v1568 = vunpack.c.h.b16 %v760
    %v1569 = vunpack.c.l.b16 %v761
    %v1570 = vunpack.c.h.b16 %v761
    %v1571 = vunpack.c.l.b16 %v762
    %v1572 = vunpack.c.h.b16 %v762
    %v1573 = vunpack.c.l.b16 %v763
    %v1574 = vunpack.c.h.b16 %v763
    %v1575 = vunpack.c.l.b16 %v764
    %v1576 = vunpack.c.h.b16 %v764
    %v1577 = vunpack.c.l.b16 %v765
    %v1578 = vunpack.c.h.b16 %v765
    %v1579 = vunpack.c.l.b16 %v766
    %v1580 = vunpack.c.h.b16 %v766
    %v1581 = vunpack.c.l.b16 %v767
    %v1582 = vunpack.c.h.b16 %v767
    %v1583 = vunpack.c.l.b16 %v768
    %v1584 = vunpack.c.h.b16 %v768
    %v1585 = vunpack.c.l.b16 %v769
    %v1586 = vunpack.c.h.b16 %v769
    %v1587 = vunpack.c.l.b16 %v770
    %v1588 = vunpack.c.h.b16 %v770
    %v1589 = vunpack.c.l.b16 %v771
    %v1590 = vunpack.c.h.b16 %v771
    %v1591 = vunpack.c.l.b16 %v772
    %v1592 = vunpack.c.h.b16 %v772
    %v1593 = vunpack.c.l.b16 %v773
    %v1594 = vunpack.c.h.b16 %v773
    %v1595 = vunpack.c.l.b16 %v774
    %v1596 = vunpack.c.h.b16 %v774
    %v1597 = vunpack.c.l.b16 %v775
    %v1598 = vunpack.c.h.b16 %v775
    %v1599 = vunpack.c.l.b16 %v776
    %v1600 = vunpack.c.h.b16 %v776
    %v1601 = vunpack.c.l.b16 %v777
    %v1602 = vunpack.c.h.b16 %v777
    %v1603 = vunpack.c.l.b16 %v778
    %v1604 = vunpack.c.h.b16 %v778
    %v1605 = vunpack.c.l.b16 %v779
    %v1606 = vunpack.c.h.b16 %v779
    %v1607 = vunpack.c.l.b16 %v780
    %v1608 = vunpack.c.h.b16 %v780
    %v1609 = vunpack.c.l.b16 %v781
    %v1610 = vunpack.c.h.b16 %v781
    %v1611 = vunpack.c.l.b16 %v782
    %v1612 = vunpack.c.h.b16 %v782
    %v1613 = vunpack.c.l.b16 %v783
    %v1614 = vunpack.c.h.b16 %v783
    %v1615 = vunpack.c.l.b16 %v784
    %v1616 = vunpack.c.h.b16 %v784
    %v1617 = vunpack.c.l.b16 %v785
    %v1618 = vunpack.c.h.b16 %v785
    %v1619 = vunpack.c.l.b16 %v786
    %v1620 = vunpack.c.h.b16 %v786
    %v1621 = vunpack.c.l.b16 %v787
    %v1622 = vunpack.c.h.b16 %v787
    %v1623 = vunpack.c.l.b16 %v788
    %v1624 = vunpack.c.h.b16 %v788
    %v1625 = vunpack.c.l.b16 %v789
    %v1626 = vunpack.c.h.b16 %v789
    %v1627 = vunpack.c.l.b16 %v790
    %v1628 = vunpack.c.h.b16 %v790
    %v1629 = vunpack.c.l.b16 %v791
    %v1630 = vunpack.c.h.b16 %v791
    %v1631 = vunpack.c.l.b16 %v792
    %v1632 = vunpack.c.h.b16 %v792
    %v1633 = vunpack.c.l.b16 %v793
    %v1634 = vunpack.c.h.b16 %v793
    %v1635 = vunpack.c.l.b16 %v794
    %v1636 = vunpack.c.h.b16 %v794
    %v1637 = vunpack.c.l.b16 %v795
    %v1638 = vunpack.c.h.b16 %v795
    %v1639 = vunpack.c.l.b16 %v796
    %v1640 = vunpack.c.h.b16 %v796
    %v1641 = vunpack.c.l.b16 %v797
    %v1642 = vunpack.c.h.b16 %v797
    %v1643 = vunpack.c.l.b16 %v798
    %v1644 = vunpack.c.h.b16 %v798
    %v1645 = vunpack.c.l.b16 %v799
    %v1646 = vunpack.c.h.b16 %v799
    %v1647 = vunpack.c.l.b16 %v800
    %v1648 = vunpack.c.h.b16 %v800
    %v1649 = vunpack.c.l.b16 %v801
    %v1650 = vunpack.c.h.b16 %v801
    %v1651 = vunpack.c.l.b16 %v802
    %v1652 = vunpack.c.h.b16 %v802
    %v1653 = vunpack.c.l.b16 %v803
    %v1654 = vunpack.c.h.b16 %v803
    %v1655 = vunpack.c.l.b16 %v804
    %v1656 = vunpack.c.h.b16 %v804
    %v1657 = vunpack.c.l.b16 %v805
    %v1658 = vunpack.c.h.b16 %v805
    %v1659 = vunpack.c.l.b16 %v806
    %v1660 = vunpack.c.h.b16 %v806
    %v1661 = vunpack.c.l.b16 %v807
    %v1662 = vunpack.c.h.b16 %v807
    %v1663 = vunpack.c.l.b16 %v808
    %v1664 = vunpack.c.h.b16 %v808
    %v1665 = vunpack.c.l.b16 %v809
    %v1666 = vunpack.c.h.b16 %v809
    %v1667 = vunpack.c.l.b16 %v810
    %v1668 = vunpack.c.h.b16 %v810
    %v1669 = vunpack.c.l.b16 %v811
    %v1670 = vunpack.c.h.b16 %v811
    %v1671 = vunpack.c.l.b16 %v812
    %v1672 = vunpack.c.h.b16 %v812
    %v1673 = vunpack.c.l.b16 %v813
    %v1674 = vunpack.c.h.b16 %v813
    %v1675 = vunpack.c.l.b16 %v814
    %v1676 = vunpack.c.h.b16 %v814
    %v1677 = vunpack.c.l.b16 %v815
    %v1678 = vunpack.c.h.b16 %v815
    %v1679 = vunpack.c.l.b16 %v816
    %v1680 = vunpack.c.h.b16 %v816
    %v1681 = vunpack.c.l.b16 %v817
    %v1682 = vunpack.c.h.b16 %v817
    %v1683 = vunpack.c.l.b16 %v818
    %v1684 = vunpack.c.h.b16 %v818
    %v1685 = vunpack.c.l.b16 %v819
    %v1686 = vunpack.c.h.b16 %v819
    %v1687 = vunpack.c.l.b16 %v820
    %v1688 = vunpack.c.h.b16 %v820
    %v1689 = vunpack.c.l.b16 %v821
    %v1690 = vunpack.c.h.b16 %v821
    %v1691 = vunpack.c.l.b16 %v822
    %v1692 = vunpack.c.h.b16 %v822
    %v1693 = vunpack.c.l.b16 %v823
    %v1694 = vunpack.c.h.b16 %v823
    %v1695 = vunpack.c.l.b16 %v824
    %v1696 = vunpack.c.h.b16 %v824
    %v1697 = vunpack.c.l.b16 %v825
    %v1698 = vunpack.c.h.b16 %v825
    %v1699 = vunpack.c.l.b16 %v826
    %v1700 = vunpack.c.h.b16 %v826
    %v1701 = vunpack.c.l.b16 %v827
    %v1702 = vunpack.c.h.b16 %v827
    %v1703 = vunpack.c.l.b16 %v828
    %v1704 = vunpack.c.h.b16 %v828
    %v1705 = vunpack.c.l.b16 %v829
    %v1706 = vunpack.c.h.b16 %v829
    %v1707 = vunpack.c.l.b16 %v830
    %v1708 = vunpack.c.h.b16 %v830
    %v1709 = vunpack.c.l.b16 %v831
    %v1710 = vunpack.c.h.b16 %v831
    %v1711 = vunpack.c.l.b16 %v832
    %v1712 = vunpack.c.h.b16 %v832
    %v1713 = vunpack.c.l.b16 %v833
    %v1714 = vunpack.c.h.b16 %v833
    %v1715 = vunpack.c.l.b16 %v834
    %v1716 = vunpack.c.h.b16 %v834
    %v1717 = vunpack.c.l.b16 %v835
    %v1718 = vunpack.c.h.b16 %v835
    %v1719 = vunpack.c.l.b16 %v836
    %v1720 = vunpack.c.h.b16 %v836
    %v1721 = vunpack.c.l.b16 %v837
    %v1722 = vunpack.c.h.b16 %v837
    %v1723 = vunpack.c.l.b16 %v838
    %v1724 = vunpack.c.h.b16 %v838
    %v1725 = vunpack.c.l.b16 %v839
    %v1726 = vunpack.c.h.b16 %v839
    %v1727 = vunpack.c.l.b16 %v840
    %v1728 = vunpack.c.h.b16 %v840
    %v1729 = vunpack.c.l.b16 %v841
    %v1730 = vunpack.c.h.b16 %v841
    %v1731 = vunpack.c.l.b16 %v842
    %v1732 = vunpack.c.h.b16 %v842
    %v1733 = vunpack.c.l.b16 %v843
    %v1734 = vunpack.c.h.b16 %v843
    %v1735 = vunpack.c.l.b16 %v844
    %v1736 = vunpack.c.h.b16 %v844
    %v1737 = vunpack.c.l.b16 %v845
    %v1738 = vunpack.c.h.b16 %v845
    %v1739 = vunpack.c.l.b16 %v846
    %v1740 = vunpack.c.h.b16 %v846
    %v1741 = vunpack.c.l.b16 %v847
    %v1742 = vunpack.c.h.b16 %v847
    %v1743 = vunpack.c.l.b16 %v848
    %v1744 = vunpack.c.h.b16 %v848
    %v1745 = vpack.c.b16 %v1175, %v1169
    %v1746 = vpack.c.b16 %v1176, %v1170
    %v1747 = vpack.c.b16 %v1177, %v1171
    %v1748 = vpack.c.b16 %v1178, %v1172
    %v1749 = vpack.c.b16 %v1179, %v1173
    %v1750 = vpack.c.b16 %v1180, %v1174
    %v1751 = vpack.c.b16 %v1187, %v1181
    %v1752 = vpack.c.b16 %v1188, %v1182
    %v1753 = vpack.c.b16 %v1189, %v1183
    %v1754 = vpack.c.b16 %v1190, %v1184
    %v1755 = vpack.c.b16 %v1191, %v1185
    %v1756 = vpack.c.b16 %v1192, %v1186
    %v1757 = vpack.c.b16 %v1199, %v1193
    %v1758 = vpack.c.b16 %v1200, %v1194
    %v1759 = vpack.c.b16 %v1201, %v1195
    %v1760 = vpack.c.b16 %v1202, %v1196
    %v1761 = vpack.c.b16 %v1203, %v1197
    %v1762 = vpack.c.b16 %v1204, %v1198
    %v1763 = vpack.c.b16 %v1211, %v1205
    %v1764 = vpack.c.b16 %v1212, %v1206
    %v1765 = vpack.c.b16 %v1213, %v1207
    %v1766 = vpack.c.b16 %v1214, %v1208
    %v1767 = vpack.c.b16 %v1215, %v1209
    %v1768 = vpack.c.b16 %v1216, %v1210
    %v1769 = vpack.c.b16 %v1223, %v1217
    %v1770 = vpack.c.b16 %v1224, %v1218
    %v1771 = vpack.c.b16 %v1225, %v1219
    %v1772 = vpack.c.b16 %v1226, %v1220
    %v1773 = vpack.c.b16 %v1227, %v1221
    %v1774 = vpack.c.b16 %v1228, %v1222
    %v1775 = vpack.c.b16 %v1235, %v1229
    %v1776 = vpack.c.b16 %v1236, %v1230
    %v1777 = vpack.c.b16 %v1237, %v1231
    %v1778 = vpack.c.b16 %v1238, %v1232
    %v1779 = vpack.c.b16 %v1239, %v1233
    %v1780 = vpack.c.b16 %v1240, %v1234
    %v1781 = vpack.c.b16 %v1247, %v1241
    %v1782 = vpack.c.b16 %v1248, %v1242
    %v1783 = vpack.c.b16 %v1249, %v1243
    %v1784 = vpack.c.b16 %v1250, %v1244
    %v1785 = vpack.c.b16 %v1251, %v1245
    %v1786 = vpack.c.b16 %v1252, %v1246
    %v1787 = vpack.c.b16 %v1259, %v1253
    %v1788 = vpack.c.b16 %v1260, %v1254
    %v1789 = vpack.c.b16 %v1261, %v1255
    %v1790 = vpack.c.b16 %v1262, %v1256
    %v1791 = vpack.c.b16 %v1263, %v1257
    %v1792 = vpack.c.b16 %v1264, %v1258
    %v1793 = vpack.c.b16 %v1271, %v1265
    %v1794 = vpack.c.b16 %v1272, %v1266
    %v1795 = vpack.c.b16 %v1273, %v1267
    %v1796 = vpack.c.b16 %v1274, %v1268
    %v1797 = vpack.c.b16 %v1275, %v1269
    %v1798 = vpack.c.b16 %v1276, %v1270
    %v1799 = vpack.c.b16 %v1283, %v1277
    %v1800 = vpack.c.b16 %v1284, %v1278
    %v1801 = vpack.c.b16 %v1285, %v1279
    %v1802 = vpack.c.b16 %v1286, %v1280
    %v1803 = vpack.c.b16 %v1287, %v1281
    %v1804 = vpack.c.b16 %v1288, %v1282
    %v1805 = vpack.c.b16 %v1295, %v1289
    %v1806 = vpack.c.b16 %v1296, %v1290
    %v1807 = vpack.c.b16 %v1297, %v1291
    %v1808 = vpack.c.b16 %v1298, %v1292
    %v1809 = vpack.c.b16 %v1299, %v1293
    %v1810 = vpack.c.b16 %v1300, %v1294
    %v1811 = vpack.c.b16 %v1307, %v1301
    %v1812 = vpack.c.b16 %v1308, %v1302
    %v1813 = vpack.c.b16 %v1309, %v1303
    %v1814 = vpack.c.b16 %v1310, %v1304
    %v1815 = vpack.c.b16 %v1311, %v1305
    %v1816 = vpack.c.b16 %v1312, %v1306
    %v1817 = vpack.c.b16 %v1319, %v1313
    %v1818 = vpack.c.b16 %v1320, %v1314
    %v1819 = vpack.c.b16 %v1321, %v1315
    %v1820 = vpack.c.b16 %v1322, %v1316
    %v1821 = vpack.c.b16 %v1323, %v1317
    %v1822 = vpack.c.b16 %v1324, %v1318
    %v1823 = vpack.c.b16 %v1331, %v1325
    %v1824 = vpack.c.b16 %v1332, %v1326
    %v1825 = vpack.c.b16 %v1333, %v1327
    %v1826 = vpack.c.b16 %v1334, %v1328
    %v1827 = vpack.c.b16 %v1335, %v1329
    %v1828 = vpack.c.b16 %v1336, %v1330
    %v1829 = vpack.c.b16 %v1343, %v1337
    %v1830 = vpack.c.b16 %v1344, %v1338
    %v1831 = vpack.c.b16 %v1345, %v1339
    %v1832 = vpack.c.b16 %v1346, %v1340
    %v1833 = vpack.c.b16 %v1347, %v1341
    %v1834 = vpack.c.b16 %v1348, %v1342
    %v1835 = vpack.c.b16 %v1355, %v1349
    %v1836 = vpack.c.b16 %v1356, %v1350
    %v1837 = vpack.c.b16 %v1357, %v1351
    %v1838 = vpack.c.b16 %v1358, %v1352
    %v1839 = vpack.c.b16 %v1359, %v1353
    %v1840 = vpack.c.b16 %v1360, %v1354
    %v1841 = vpack.c.b16 %v1367, %v1361
    %v1842 = vpack.c.b16 %v1368, %v1362
    %v1843 = vpack.c.b16 %v1369, %v1363
    %v1844 = vpack.c.b16 %v1370, %v1364
    %v1845 = vpack.c.b16 %v1371, %v1365
    %v1846 = vpack.c.b16 %v1372, %v1366
    %v1847 = vpack.c.b16 %v1379, %v1373
    %v1848 = vpack.c.b16 %v1380, %v1374
    %v1849 = vpack.c.b16 %v1381, %v1375
    %v1850 = vpack.c.b16 %v1382, %v1376
    %v1851 = vpack.c.b16 %v1383, %v1377
    %v1852 = vpack.c.b16 %v1384, %v1378
    %v1853 = vpack.c.b16 %v1391, %v1385
    %v1854 = vpack.c.b16 %v1392, %v1386
    %v1855 = vpack.c.b16 %v1393, %v1387
    %v1856 = vpack.c.b16 %v1394, %v1388
    %v1857 = vpack.c.b16 %v1395, %v1389
    %v1858 = vpack.c.b16 %v1396, %v1390
    %v1859 = vpack.c.b16 %v1403, %v1397
    %v1860 = vpack.c.b16 %v1404, %v1398
    %v1861 = vpack.c.b16 %v1405, %v1399
    %v1862 = vpack.c.b16 %v1406, %v1400
    %v1863 = vpack.c.b16 %v1407, %v1401
    %v1864 = vpack.c.b16 %v1408, %v1402
    %v1865 = vpack.c.b16 %v1415, %v1409
    %v1866 = vpack.c.b16 %v1416, %v1410
    %v1867 = vpack.c.b16 %v1417, %v1411
    %v1868 = vpack.c.b16 %v1418, %v1412
    %v1869 = vpack.c.b16 %v1419, %v1413
    %v1870 = vpack.c.b16 %v1420, %v1414
    %v1871 = vpack.c.b16 %v1427, %v1421
    %v1872 = vpack.c.b16 %v1428, %v1422
    %v1873 = vpack.c.b16 %v1429, %v1423
    %v1874 = vpack.c.b16 %v1430, %v1424
    %v1875 = vpack.c.b16 %v1431, %v1425
    %v1876 = vpack.c.b16 %v1432, %v1426
    %v1877 = vpack.c.b16 %v1439, %v1433
    %v1878 = vpack.c.b16 %v1440, %v1434
    %v1879 = vpack.c.b16 %v1441, %v1435
    %v1880 = vpack.c.b16 %v1442, %v1436
    %v1881 = vpack.c.b16 %v1443, %v1437
    %v1882 = vpack.c.b16 %v1444, %v1438
    %v1883 = vpack.c.b16 %v1451, %v1445
    %v1884 = vpack.c.b16 %v1452, %v1446
    %v1885 = vpack.c.b16 %v1453, %v1447
    %v1886 = vpack.c.b16 %v1454, %v1448
    %v1887 = vpack.c.b16 %v1455, %v1449
    %v1888 = vpack.c.b16 %v1456, %v1450
    %v1889 = vpack.c.b16 %v1463, %v1457
    %v1890 = vpack.c.b16 %v1464, %v1458
    %v1891 = vpack.c.b16 %v1465, %v1459
    %v1892 = vpack.c.b16 %v1466, %v1460
    %v1893 = vpack.c.b16 %v1467, %v1461
    %v1894 = vpack.c.b16 %v1468, %v1462
    %v1895 = vpack.c.b16 %v1475, %v1469
    %v1896 = vpack.c.b16 %v1476, %v1470
    %v1897 = vpack.c.b16 %v1477, %v1471
    %v1898 = vpack.c.b16 %v1478, %v1472
    %v1899 = vpack.c.b16 %v1479, %v1473
    %v1900 = vpack.c.b16 %v1480, %v1474
    %v1901 = vpack.c.b16 %v1487, %v1481
    %v1902 = vpack.c.b16 %v1488, %v1482
    %v1903 = vpack.c.b16 %v1489, %v1483
    %v1904 = vpack.c.b16 %v1490, %v1484
    %v1905 = vpack.c.b16 %v1491, %v1485
    %v1906 = vpack.c.b16 %v1492, %v1486
    %v1907 = vpack.c.b16 %v1499, %v1493
    %v1908 = vpack.c.b16 %v1500, %v1494
    %v1909 = vpack.c.b16 %v1501, %v1495
    %v1910 = vpack.c.b16 %v1502, %v1496
    %v1911 = vpack.c.b16 %v1503, %v1497
    %v1912 = vpack.c.b16 %v1504, %v1498
    %v1913 = vpack.c.b16 %v1511, %v1505
    %v1914 = vpack.c.b16 %v1512, %v1506
    %v1915 = vpack.c.b16 %v1513, %v1507
    %v1916 = vpack.c.b16 %v1514, %v1508
    %v1917 = vpack.c.b16 %v1515, %v1509
    %v1918 = vpack.c.b16 %v1516, %v1510
    %v1919 = vpack.c.b16 %v1523, %v1517
    %v1920 = vpack.c.b16 %v1524, %v1518
    %v1921 = vpack.c.b16 %v1525, %v1519
    %v1922 = vpack.c.b16 %v1526, %v1520
    %v1923 = vpack.c.b16 %v1527, %v1521
    %v1924 = vpack.c.b16 %v1528, %v1522
    %v1925 = vpack.c.b16 %v1535, %v1529
    %v1926 = vpack.c.b16 %v1536, %v1530
    %v1927 = vpack.c.b16 %v1537, %v1531
    %v1928 = vpack.c.b16 %v1538, %v1532
    %v1929 = vpack.c.b16 %v1539, %v1533
    %v1930 = vpack.c.b16 %v1540, %v1534
    %v1931 = vpack.c.b16 %v1547, %v1541
    %v1932 = vpack.c.b16 %v1548, %v1542
    %v1933 = vpack.c.b16 %v1549, %v1543
    %v1934 = vpack.c.b16 %v1550, %v1544
    %v1935 = vpack.c.b16 %v1551, %v1545
    %v1936 = vpack.c.b16 %v1552, %v1546
    %v1937 = vpack.c.b16 %v1559, %v1553
    %v1938 = vpack.c.b16 %v1560, %v1554
    %v1939 = vpack.c.b16 %v1561, %v1555
    %v1940 = vpack.c.b16 %v1562, %v1556
    %v1941 = vpack.c.b16 %v1563, %v1557
    %v1942 = vpack.c.b16 %v1564, %v1558
    %v1943 = vpack.c.b16 %v1571, %v1565
    %v1944 = vpack.c.b16 %v1572, %v1566
    %v1945 = vpack.c.b16 %v1573, %v1567
    %v1946 = vpack.c.b16 %v1574, %v1568
    %v1947 = vpack.c.b16 %v1575, %v1569
    %v1948 = vpack.c.b16 %v1576, %v1570
    %v1949 = vpack.c.b16 %v1583, %v1577
    %v1950 = vpack.c.b16 %v1584, %v1578
    %v1951 = vpack.c.b16 %v1585, %v1579
    %v1952 = vpack.c.b16 %v1586, %v1580
    %v1953 = vpack.c.b16 %v1587, %v1581
    %v1954 = vpack.c.b16 %v1588, %v1582
    %v1955 = vpack.c.b16 %v1595, %v1589
    %v1956 = vpack.c.b16 %v1596, %v1590
    %v1957 = vpack.c.b16 %v1597, %v1591
    %v1958 = vpack.c.b16 %v1598, %v1592
    %v1959 = vpack.c.b16 %v1599, %v1593
    %v1960 = vpack.c.b16 %v1600, %v1594
    %v1961 = vpack.c.b16 %v1607, %v1601
    %v1962 = vpack.c.b16 %v1608, %v1602
    %v1963 = vpack.c.b16 %v1609, %v1603
    %v1964 = vpack.c.b16 %v1610, %v1604
    %v1965 = vpack.c.b16 %v1611, %v1605
    %v1966 = vpack.c.b16 %v1612, %v1606
    %v1967 = vpack.c.b16 %v1619, %v1613
    %v1968 = vpack.c.b16 %v1620, %v1614
    %v1969 = vpack.c.b16 %v1621, %v1615
    %v1970 = vpack.c.b16 %v1622, %v1616
    %v1971 = vpack.c.b16 %v1623, %v1617
    %v1972 = vpack.c.b16 %v1624, %v1618
    %v1973 = vpack.c.b16 %v1631, %v1625
    %v1974 = vpack.c.b16 %v1632, %v1626
    %v1975 = vpack.c.b16 %v1633, %v1627
    %v1976 = vpack.c.b16 %v1634, %v1628
    %v1977 = vpack.c.b16 %v1635, %v1629
    %v1978 = vpack.c.b16 %v1636, %v1630
    %v1979 = vpack.c.b16 %v1643, %v1637
    %v1980 = vpack.c.b16 %v1644, %v1638
    %v1981 = vpack.c.b16 %v1645, %v1639
    %v1982 = vpack.c.b16 %v1646, %v1640
    %v1983 = vpack.c.b16 %v1647, %v1641
    %v1984 = vpack.c.b16 %v1648, %v1642
    %v1985 = vpack.c.b16 %v1655, %v1649
    %v1986 = vpack.c.b16 %v1656, %v1650
    %v1987 = vpack.c.b16 %v1657, %v1651
    %v1988 = vpack.c.b16 %v1658, %v1652
    %v1989 = vpack.c.b16 %v1659, %v1653
    %v1990 = vpack.c.b16 %v1660, %v1654
    %v1991 = vpack.c.b16 %v1667, %v1661
    %v1992 = vpack.c.b16 %v1668, %v1662
    %v1993 = vpack.c.b16 %v1669, %v1663
    %v1994 = vpack.c.b16 %v1670, %v1664
    %v1995 = vpack.c.b16 %v1671, %v1665
    %v1996 = vpack.c.b16 %v1672, %v1666
    %v1997 = vpack.c.b16 %v1679, %v1673
    %v1998 = vpack.c.b16 %v1680, %v1674
    %v1999 = vpack.c.b16 %v1681, %v1675
    %v2000 = vpack.c.b16 %v1682, %v1676
    %v2001 = vpack.c.b16 %v1683, %v1677
    %v2002 = vpack.c.b16 %v1684, %v1678
    %v2003 = vpack.c.b16 %v1691, %v1685
    %v2004 = vpack.c.b16 %v1692, %v1686
    %v2005 = vpack.c.b16 %v1693, %v1687
    %v2006 = vpack.c.b16 %v1694, %v1688
    %v2007 = vpack.c.b16 %v1695, %v1689
    %v2008 = vpack.c.b16 %v1696, %v1690
    %v2009 = vpack.c.b16 %v1703, %v1697
    %v2010 = vpack.c.b16 %v1704, %v1698
    %v2011 = vpack.c.b16 %v1705, %v1699
    %v2012 = vpack.c.b16 %v1706, %v1700
    %v2013 = vpack.c.b16 %v1707, %v1701
    %v2014 = vpack.c.b16 %v1708, %v1702
    %v2015 = vpack.c.b16 %v1715, %v1709
    %v2016 = vpack.c.b16 %v1716, %v1710
    %v2017 = vpack.c.b16 %v1717, %v1711
    %v2018 = vpack.c.b16 %v1718, %v1712
    %v2019 = vpack.c.b16 %v1719, %v1713
    %v2020 = vpack.c.b16 %v1720, %v1714
    %v2021 = vpack.c.b16 %v1727, %v1721
    %v2022 = vpack.c.b16 %v1728, %v1722
    %v2023 = vpack.c.b16 %v1729, %v1723
    %v2024 = vpack.c.b16 %v1730, %v1724
    %v2025 = vpack.c.b16 %v1731, %v1725
    %v2026 = vpack.c.b16 %v1732, %v1726
    %v2027 = vpack.c.b16 %v1739, %v1733
    %v2028 = vpack.c.b16 %v1740, %v1734
    %v2029 = vpack.c.b16 %v1741, %v1735
    %v2030 = vpack.c.b16 %v1742, %v1736
    %v2031 = vpack.c.b16 %v1743, %v1737
    %v2032 = vpack.c.b16 %v1744, %v1738
    %2321 = vmatprep.subr.bf16.mxu0 %v1788
    %2322 = vmatpush1.bf16.msra.mxu0 %v1787
    %2323 = vmatprep.subr.bf16.mxu0 %v1782
    %2324 = vmatpush1.bf16.msra.mxu0 %v1781
    %2325 = vmatprep.subr.bf16.mxu0 %v1776
    %2326 = vmatpush1.bf16.msra.mxu0 %v1775
    %2327 = vmatprep.subr.bf16.mxu0 %v1770
    %2328 = vmatpush1.bf16.msra.mxu0 %v1769
    %2329 = vmatprep.subr.bf16.mxu0 %v1764
    %2330 = vmatpush1.bf16.msra.mxu0 %v1763
    %2331 = vmatprep.subr.bf16.mxu0 %v1758
    %2332 = vmatpush1.bf16.msra.mxu0 %v1757
    %2333 = vmatprep.subr.bf16.mxu0 %v1752
    %2334 = vmatpush1.bf16.msra.mxu0 %v1751
    %2335 = vmatprep.subr.bf16.mxu0 %v1746
    %2336 = vmatpush1.bf16.msra.mxu0 %v1745
    %2337 = vmatprep.subr.bf16.mxu0 %v1836
    %2338 = vmatpush2.bf16.msra.mxu0 %v1835
    %2339 = vmatprep.subr.bf16.mxu0 %v1830
    %2340 = vmatpush2.bf16.msra.mxu0 %v1829
    %2341 = vmatprep.subr.bf16.mxu0 %v1824
    %2342 = vmatpush2.bf16.msra.mxu0 %v1823
    %2343 = vmatprep.subr.bf16.mxu0 %v1818
    %2344 = vmatpush2.bf16.msra.mxu0 %v1817
    %2345 = vmatprep.subr.bf16.mxu0 %v1812
    %2346 = vmatpush2.bf16.msra.mxu0 %v1811
    %2347 = vmatprep.subr.bf16.mxu0 %v1806
    %2348 = vmatpush2.bf16.msra.mxu0 %v1805
    %2349 = vmatprep.subr.bf16.mxu0 %v1800
    %2350 = vmatpush2.bf16.msra.mxu0 %v1799
    %2351 = vmatprep.subr.bf16.mxu0 %v1794
    %2352 = vmatpush2.bf16.msra.mxu0 %v1793
    %2353 = vmatprep.mubr.bf16.mxu0 %v556
    %2354 = vmatmul.mubr.bf16.gmra.mxu0 %v555
    %v2355 = vpop.f32.mrf.mxu0
    %v2356 = vadd.f32 %v854, %v2355
    %v2357 = vpop.f32.mrf.mxu0
    %v2358 = vadd.f32 %v858, %v2357
    %v2359 = vpop.f32.mrf.mxu0
    %v2360 = vpop.f32.mrf.mxu0
    %2361 = vdwg.mxu0
    %2362 = vmatprep.subr.bf16.mxu0 %v1884
    %2363 = vmatpush1.bf16.msra.mxu0 %v1883
    %2364 = vmatprep.subr.bf16.mxu0 %v1878
    %2365 = vmatpush1.bf16.msra.mxu0 %v1877
    %2366 = vmatprep.subr.bf16.mxu0 %v1872
    %2367 = vmatpush1.bf16.msra.mxu0 %v1871
    %2368 = vmatprep.subr.bf16.mxu0 %v1866
    %2369 = vmatpush1.bf16.msra.mxu0 %v1865
    %2370 = vmatprep.subr.bf16.mxu0 %v1860
    %2371 = vmatpush1.bf16.msra.mxu0 %v1859
    %2372 = vmatprep.subr.bf16.mxu0 %v1854
    %2373 = vmatpush1.bf16.msra.mxu0 %v1853
    %2374 = vmatprep.subr.bf16.mxu0 %v1848
    %2375 = vmatpush1.bf16.msra.mxu0 %v1847
    %2376 = vmatprep.subr.bf16.mxu0 %v1842
    %2377 = vmatpush1.bf16.msra.mxu0 %v1841
    %2378 = vmatprep.subr.bf16.mxu0 %v1932
    %2379 = vmatpush2.bf16.msra.mxu0 %v1931
    %2380 = vmatprep.subr.bf16.mxu0 %v1926
    %2381 = vmatpush2.bf16.msra.mxu0 %v1925
    %2382 = vmatprep.subr.bf16.mxu0 %v1920
    %2383 = vmatpush2.bf16.msra.mxu0 %v1919
    %2384 = vmatprep.subr.bf16.mxu0 %v1914
    %2385 = vmatpush2.bf16.msra.mxu0 %v1913
    %2386 = vmatprep.subr.bf16.mxu0 %v1908
    %2387 = vmatpush2.bf16.msra.mxu0 %v1907
    %2388 = vmatprep.subr.bf16.mxu0 %v1902
    %2389 = vmatpush2.bf16.msra.mxu0 %v1901
    %2390 = vmatprep.subr.bf16.mxu0 %v1896
    %2391 = vmatpush2.bf16.msra.mxu0 %v1895
    %2392 = vmatprep.subr.bf16.mxu0 %v1890
    %2393 = vmatpush2.bf16.msra.mxu0 %v1889
    %2394 = vmatprep.mubr.bf16.mxu0 %v558
    %2395 = vmatmul.mubr.bf16.gmra.mxu0 %v557
    %v2396 = vpop.f32.mrf.mxu0
    %v2397 = vadd.f32 %v2356, %v2396
    %v2398 = vpop.f32.mrf.mxu0
    %v2399 = vadd.f32 %v2358, %v2398
    %v2400 = vpop.f32.mrf.mxu0
    %v2401 = vpop.f32.mrf.mxu0
    %2402 = vdwg.mxu0
    %2403 = vmatprep.subr.bf16.mxu0 %v1980
    %2404 = vmatpush1.bf16.msra.mxu0 %v1979
    %2405 = vmatprep.subr.bf16.mxu0 %v1974
    %2406 = vmatpush1.bf16.msra.mxu0 %v1973
    %2407 = vmatprep.subr.bf16.mxu0 %v1968
    %2408 = vmatpush1.bf16.msra.mxu0 %v1967
    %2409 = vmatprep.subr.bf16.mxu0 %v1962
    %2410 = vmatpush1.bf16.msra.mxu0 %v1961
    %2411 = vmatprep.subr.bf16.mxu0 %v1956
    %2412 = vmatpush1.bf16.msra.mxu0 %v1955
    %2413 = vmatprep.subr.bf16.mxu0 %v1950
    %2414 = vmatpush1.bf16.msra.mxu0 %v1949
    %2415 = vmatprep.subr.bf16.mxu0 %v1944
    %2416 = vmatpush1.bf16.msra.mxu0 %v1943
    %2417 = vmatprep.subr.bf16.mxu0 %v1938
    %2418 = vmatpush1.bf16.msra.mxu0 %v1937
    %2419 = vmatprep.subr.bf16.mxu0 %v2028
    %2420 = vmatpush2.bf16.msra.mxu0 %v2027
    %2421 = vmatprep.subr.bf16.mxu0 %v2022
    %2422 = vmatpush2.bf16.msra.mxu0 %v2021
    %2423 = vmatprep.subr.bf16.mxu0 %v2016
    %2424 = vmatpush2.bf16.msra.mxu0 %v2015
    %2425 = vmatprep.subr.bf16.mxu0 %v2010
    %2426 = vmatpush2.bf16.msra.mxu0 %v2009
    %2427 = vmatprep.subr.bf16.mxu0 %v2004
    %2428 = vmatpush2.bf16.msra.mxu0 %v2003
    %2429 = vmatprep.subr.bf16.mxu0 %v1998
    %2430 = vmatpush2.bf16.msra.mxu0 %v1997
    %2431 = vmatprep.subr.bf16.mxu0 %v1992
    %2432 = vmatpush2.bf16.msra.mxu0 %v1991
    %2433 = vmatprep.subr.bf16.mxu0 %v1986
    %2434 = vmatpush2.bf16.msra.mxu0 %v1985
    %2435 = vmatprep.mubr.bf16.mxu0 %v560
    %2436 = vmatmul.mubr.bf16.gmra.mxu0 %v559
    %v2437 = vpop.f32.mrf.mxu0
    %v2438 = vadd.f32 %v2397, %v2437
    %v2439 = vpop.f32.mrf.mxu0
    %v2440 = vadd.f32 %v2399, %v2439
    %v2441 = vpop.f32.mrf.mxu0
    %v2442 = vpop.f32.mrf.mxu0
    %2443 = vdwg.mxu0
    %2444 = vmatprep.subr.bf16.mxu0 %v1790
    %2445 = vmatpush1.bf16.msra.mxu0 %v1789
    %2446 = vmatprep.subr.bf16.mxu0 %v1784
    %2447 = vmatpush1.bf16.msra.mxu0 %v1783
    %2448 = vmatprep.subr.bf16.mxu0 %v1778
    %2449 = vmatpush1.bf16.msra.mxu0 %v1777
    %2450 = vmatprep.subr.bf16.mxu0 %v1772
    %2451 = vmatpush1.bf16.msra.mxu0 %v1771
    %2452 = vmatprep.subr.bf16.mxu0 %v1766
    %2453 = vmatpush1.bf16.msra.mxu0 %v1765
    %2454 = vmatprep.subr.bf16.mxu0 %v1760
    %2455 = vmatpush1.bf16.msra.mxu0 %v1759
    %2456 = vmatprep.subr.bf16.mxu0 %v1754
    %2457 = vmatpush1.bf16.msra.mxu0 %v1753
    %2458 = vmatprep.subr.bf16.mxu0 %v1748
    %2459 = vmatpush1.bf16.msra.mxu0 %v1747
    %2460 = vmatprep.subr.bf16.mxu0 %v1838
    %2461 = vmatpush2.bf16.msra.mxu0 %v1837
    %2462 = vmatprep.subr.bf16.mxu0 %v1832
    %2463 = vmatpush2.bf16.msra.mxu0 %v1831
    %2464 = vmatprep.subr.bf16.mxu0 %v1826
    %2465 = vmatpush2.bf16.msra.mxu0 %v1825
    %2466 = vmatprep.subr.bf16.mxu0 %v1820
    %2467 = vmatpush2.bf16.msra.mxu0 %v1819
    %2468 = vmatprep.subr.bf16.mxu0 %v1814
    %2469 = vmatpush2.bf16.msra.mxu0 %v1813
    %2470 = vmatprep.subr.bf16.mxu0 %v1808
    %2471 = vmatpush2.bf16.msra.mxu0 %v1807
    %2472 = vmatprep.subr.bf16.mxu0 %v1802
    %2473 = vmatpush2.bf16.msra.mxu0 %v1801
    %2474 = vmatprep.subr.bf16.mxu0 %v1796
    %2475 = vmatpush2.bf16.msra.mxu0 %v1795
    %2476 = vmatprep.mubr.bf16.mxu0 %v556
    %2477 = vmatmul.mubr.bf16.gmra.mxu0 %v555
    %v2478 = vpop.f32.mrf.mxu0
    %v2479 = vadd.f32 %v862, %v2478
    %v2480 = vpop.f32.mrf.mxu0
    %v2481 = vadd.f32 %v866, %v2480
    %v2482 = vpop.f32.mrf.mxu0
    %v2483 = vpop.f32.mrf.mxu0
    %2484 = vdwg.mxu0
    %2485 = vmatprep.subr.bf16.mxu0 %v1886
    %2486 = vmatpush1.bf16.msra.mxu0 %v1885
    %2487 = vmatprep.subr.bf16.mxu0 %v1880
    %2488 = vmatpush1.bf16.msra.mxu0 %v1879
    %2489 = vmatprep.subr.bf16.mxu0 %v1874
    %2490 = vmatpush1.bf16.msra.mxu0 %v1873
    %2491 = vmatprep.subr.bf16.mxu0 %v1868
    %2492 = vmatpush1.bf16.msra.mxu0 %v1867
    %2493 = vmatprep.subr.bf16.mxu0 %v1862
    %2494 = vmatpush1.bf16.msra.mxu0 %v1861
    %2495 = vmatprep.subr.bf16.mxu0 %v1856
    %2496 = vmatpush1.bf16.msra.mxu0 %v1855
    %2497 = vmatprep.subr.bf16.mxu0 %v1850
    %2498 = vmatpush1.bf16.msra.mxu0 %v1849
    %2499 = vmatprep.subr.bf16.mxu0 %v1844
    %2500 = vmatpush1.bf16.msra.mxu0 %v1843
    %2501 = vmatprep.subr.bf16.mxu0 %v1934
    %2502 = vmatpush2.bf16.msra.mxu0 %v1933
    %2503 = vmatprep.subr.bf16.mxu0 %v1928
    %2504 = vmatpush2.bf16.msra.mxu0 %v1927
    %2505 = vmatprep.subr.bf16.mxu0 %v1922
    %2506 = vmatpush2.bf16.msra.mxu0 %v1921
    %2507 = vmatprep.subr.bf16.mxu0 %v1916
    %2508 = vmatpush2.bf16.msra.mxu0 %v1915
    %2509 = vmatprep.subr.bf16.mxu0 %v1910
    %2510 = vmatpush2.bf16.msra.mxu0 %v1909
    %2511 = vmatprep.subr.bf16.mxu0 %v1904
    %2512 = vmatpush2.bf16.msra.mxu0 %v1903
    %2513 = vmatprep.subr.bf16.mxu0 %v1898
    %2514 = vmatpush2.bf16.msra.mxu0 %v1897
    %2515 = vmatprep.subr.bf16.mxu0 %v1892
    %2516 = vmatpush2.bf16.msra.mxu0 %v1891
    %2517 = vmatprep.mubr.bf16.mxu0 %v558
    %2518 = vmatmul.mubr.bf16.gmra.mxu0 %v557
    %v2519 = vpop.f32.mrf.mxu0
    %v2520 = vadd.f32 %v2479, %v2519
    %v2521 = vpop.f32.mrf.mxu0
    %v2522 = vadd.f32 %v2481, %v2521
    %v2523 = vpop.f32.mrf.mxu0
    %v2524 = vpop.f32.mrf.mxu0
    %2525 = vdwg.mxu0
    %2526 = vmatprep.subr.bf16.mxu0 %v1982
    %2527 = vmatpush1.bf16.msra.mxu0 %v1981
    %2528 = vmatprep.subr.bf16.mxu0 %v1976
    %2529 = vmatpush1.bf16.msra.mxu0 %v1975
    %2530 = vmatprep.subr.bf16.mxu0 %v1970
    %2531 = vmatpush1.bf16.msra.mxu0 %v1969
    %2532 = vmatprep.subr.bf16.mxu0 %v1964
    %2533 = vmatpush1.bf16.msra.mxu0 %v1963
    %2534 = vmatprep.subr.bf16.mxu0 %v1958
    %2535 = vmatpush1.bf16.msra.mxu0 %v1957
    %2536 = vmatprep.subr.bf16.mxu0 %v1952
    %2537 = vmatpush1.bf16.msra.mxu0 %v1951
    %2538 = vmatprep.subr.bf16.mxu0 %v1946
    %2539 = vmatpush1.bf16.msra.mxu0 %v1945
    %2540 = vmatprep.subr.bf16.mxu0 %v1940
    %2541 = vmatpush1.bf16.msra.mxu0 %v1939
    %2542 = vmatprep.subr.bf16.mxu0 %v2030
    %2543 = vmatpush2.bf16.msra.mxu0 %v2029
    %2544 = vmatprep.subr.bf16.mxu0 %v2024
    %2545 = vmatpush2.bf16.msra.mxu0 %v2023
    %2546 = vmatprep.subr.bf16.mxu0 %v2018
    %2547 = vmatpush2.bf16.msra.mxu0 %v2017
    %2548 = vmatprep.subr.bf16.mxu0 %v2012
    %2549 = vmatpush2.bf16.msra.mxu0 %v2011
    %2550 = vmatprep.subr.bf16.mxu0 %v2006
    %2551 = vmatpush2.bf16.msra.mxu0 %v2005
    %2552 = vmatprep.subr.bf16.mxu0 %v2000
    %2553 = vmatpush2.bf16.msra.mxu0 %v1999
    %2554 = vmatprep.subr.bf16.mxu0 %v1994
    %2555 = vmatpush2.bf16.msra.mxu0 %v1993
    %2556 = vmatprep.subr.bf16.mxu0 %v1988
    %2557 = vmatpush2.bf16.msra.mxu0 %v1987
    %2558 = vmatprep.mubr.bf16.mxu0 %v560
    %2559 = vmatmul.mubr.bf16.gmra.mxu0 %v559
    %v2560 = vpop.f32.mrf.mxu0
    %v2561 = vadd.f32 %v2520, %v2560
    %v2562 = vpop.f32.mrf.mxu0
    %v2563 = vadd.f32 %v2522, %v2562
    %v2564 = vpop.f32.mrf.mxu0
    %v2565 = vpop.f32.mrf.mxu0
    %2566 = vdwg.mxu0
    %2567 = vmatprep.subr.bf16.mxu0 %v1792
    %2568 = vmatpush1.bf16.msra.mxu0 %v1791
    %2569 = vmatprep.subr.bf16.mxu0 %v1786
    %2570 = vmatpush1.bf16.msra.mxu0 %v1785
    %2571 = vmatprep.subr.bf16.mxu0 %v1780
    %2572 = vmatpush1.bf16.msra.mxu0 %v1779
    %2573 = vmatprep.subr.bf16.mxu0 %v1774
    %2574 = vmatpush1.bf16.msra.mxu0 %v1773
    %2575 = vmatprep.subr.bf16.mxu0 %v1768
    %2576 = vmatpush1.bf16.msra.mxu0 %v1767
    %2577 = vmatprep.subr.bf16.mxu0 %v1762
    %2578 = vmatpush1.bf16.msra.mxu0 %v1761
    %2579 = vmatprep.subr.bf16.mxu0 %v1756
    %2580 = vmatpush1.bf16.msra.mxu0 %v1755
    %2581 = vmatprep.subr.bf16.mxu0 %v1750
    %2582 = vmatpush1.bf16.msra.mxu0 %v1749
    %2583 = vmatprep.subr.bf16.mxu0 %v1840
    %2584 = vmatpush2.bf16.msra.mxu0 %v1839
    %2585 = vmatprep.subr.bf16.mxu0 %v1834
    %2586 = vmatpush2.bf16.msra.mxu0 %v1833
    %2587 = vmatprep.subr.bf16.mxu0 %v1828
    %2588 = vmatpush2.bf16.msra.mxu0 %v1827
    %2589 = vmatprep.subr.bf16.mxu0 %v1822
    %2590 = vmatpush2.bf16.msra.mxu0 %v1821
    %2591 = vmatprep.subr.bf16.mxu0 %v1816
    %2592 = vmatpush2.bf16.msra.mxu0 %v1815
    %2593 = vmatprep.subr.bf16.mxu0 %v1810
    %2594 = vmatpush2.bf16.msra.mxu0 %v1809
    %2595 = vmatprep.subr.bf16.mxu0 %v1804
    %2596 = vmatpush2.bf16.msra.mxu0 %v1803
    %2597 = vmatprep.subr.bf16.mxu0 %v1798
    %2598 = vmatpush2.bf16.msra.mxu0 %v1797
    %2599 = vmatprep.mubr.bf16.mxu0 %v556
    %2600 = vmatmul.mubr.bf16.gmra.mxu0 %v555
    %v2601 = vpop.f32.mrf.mxu0
    %v2602 = vadd.f32 %v870, %v2601
    %v2603 = vpop.f32.mrf.mxu0
    %v2604 = vadd.f32 %v874, %v2603
    %v2605 = vpop.f32.mrf.mxu0
    %v2606 = vpop.f32.mrf.mxu0
    %2607 = vdwg.mxu0
    %2608 = vmatprep.subr.bf16.mxu0 %v1888
    %2609 = vmatpush1.bf16.msra.mxu0 %v1887
    %2610 = vmatprep.subr.bf16.mxu0 %v1882
    %2611 = vmatpush1.bf16.msra.mxu0 %v1881
    %2612 = vmatprep.subr.bf16.mxu0 %v1876
    %2613 = vmatpush1.bf16.msra.mxu0 %v1875
    %2614 = vmatprep.subr.bf16.mxu0 %v1870
    %2615 = vmatpush1.bf16.msra.mxu0 %v1869
    %2616 = vmatprep.subr.bf16.mxu0 %v1864
    %2617 = vmatpush1.bf16.msra.mxu0 %v1863
    %2618 = vmatprep.subr.bf16.mxu0 %v1858
    %2619 = vmatpush1.bf16.msra.mxu0 %v1857
    %2620 = vmatprep.subr.bf16.mxu0 %v1852
    %2621 = vmatpush1.bf16.msra.mxu0 %v1851
    %2622 = vmatprep.subr.bf16.mxu0 %v1846
    %2623 = vmatpush1.bf16.msra.mxu0 %v1845
    %2624 = vmatprep.subr.bf16.mxu0 %v1936
    %2625 = vmatpush2.bf16.msra.mxu0 %v1935
    %2626 = vmatprep.subr.bf16.mxu0 %v1930
    %2627 = vmatpush2.bf16.msra.mxu0 %v1929
    %2628 = vmatprep.subr.bf16.mxu0 %v1924
    %2629 = vmatpush2.bf16.msra.mxu0 %v1923
    %2630 = vmatprep.subr.bf16.mxu0 %v1918
    %2631 = vmatpush2.bf16.msra.mxu0 %v1917
    %2632 = vmatprep.subr.bf16.mxu0 %v1912
    %2633 = vmatpush2.bf16.msra.mxu0 %v1911
    %2634 = vmatprep.subr.bf16.mxu0 %v1906
    %2635 = vmatpush2.bf16.msra.mxu0 %v1905
    %2636 = vmatprep.subr.bf16.mxu0 %v1900
    %2637 = vmatpush2.bf16.msra.mxu0 %v1899
    %2638 = vmatprep.subr.bf16.mxu0 %v1894
    %2639 = vmatpush2.bf16.msra.mxu0 %v1893
    %2640 = vmatprep.mubr.bf16.mxu0 %v558
    %2641 = vmatmul.mubr.bf16.gmra.mxu0 %v557
    %v2642 = vpop.f32.mrf.mxu0
    %v2643 = vadd.f32 %v2602, %v2642
    %v2644 = vpop.f32.mrf.mxu0
    %v2645 = vadd.f32 %v2604, %v2644
    %v2646 = vpop.f32.mrf.mxu0
    %v2647 = vpop.f32.mrf.mxu0
    %2648 = vdwg.mxu0
    %2649 = vmatprep.subr.bf16.mxu0 %v1984
    %2650 = vmatpush1.bf16.msra.mxu0 %v1983
    %2651 = vmatprep.subr.bf16.mxu0 %v1978
    %2652 = vmatpush1.bf16.msra.mxu0 %v1977
    %2653 = vmatprep.subr.bf16.mxu0 %v1972
    %2654 = vmatpush1.bf16.msra.mxu0 %v1971
    %2655 = vmatprep.subr.bf16.mxu0 %v1966
    %2656 = vmatpush1.bf16.msra.mxu0 %v1965
    %2657 = vmatprep.subr.bf16.mxu0 %v1960
    %2658 = vmatpush1.bf16.msra.mxu0 %v1959
    %2659 = vmatprep.subr.bf16.mxu0 %v1954
    %2660 = vmatpush1.bf16.msra.mxu0 %v1953
    %2661 = vmatprep.subr.bf16.mxu0 %v1948
    %2662 = vmatpush1.bf16.msra.mxu0 %v1947
    %2663 = vmatprep.subr.bf16.mxu0 %v1942
    %2664 = vmatpush1.bf16.msra.mxu0 %v1941
    %2665 = vmatprep.subr.bf16.mxu0 %v2032
    %2666 = vmatpush2.bf16.msra.mxu0 %v2031
    %2667 = vmatprep.subr.bf16.mxu0 %v2026
    %2668 = vmatpush2.bf16.msra.mxu0 %v2025
    %2669 = vmatprep.subr.bf16.mxu0 %v2020
    %2670 = vmatpush2.bf16.msra.mxu0 %v2019
    %2671 = vmatprep.subr.bf16.mxu0 %v2014
    %2672 = vmatpush2.bf16.msra.mxu0 %v2013
    %2673 = vmatprep.subr.bf16.mxu0 %v2008
    %2674 = vmatpush2.bf16.msra.mxu0 %v2007
    %2675 = vmatprep.subr.bf16.mxu0 %v2002
    %2676 = vmatpush2.bf16.msra.mxu0 %v2001
    %2677 = vmatprep.subr.bf16.mxu0 %v1996
    %2678 = vmatpush2.bf16.msra.mxu0 %v1995
    %2679 = vmatprep.subr.bf16.mxu0 %v1990
    %2680 = vmatpush2.bf16.msra.mxu0 %v1989
    %2681 = vmatprep.mubr.bf16.mxu0 %v560
    %2682 = vmatmul.mubr.bf16.gmra.mxu0 %v559
    %v2683 = vpop.f32.mrf.mxu0
    %v2684 = vadd.f32 %v2643, %v2683
    %v2685 = vpop.f32.mrf.mxu0
    %v2686 = vadd.f32 %v2645, %v2685
    %v2687 = vpop.f32.mrf.mxu0
    %v2688 = vpop.f32.mrf.mxu0
    %2689 = vdwg.mxu0
    %v2690 = vmax.f32 %v2438, 0.0
    %v2691 = vmax.f32 %v2440, 0.0
    %v2692 = vmax.f32 %v2561, 0.0
    %v2693 = vmax.f32 %v2563, 0.0
    %v2694 = vmax.f32 %v2684, 0.0
    %v2695 = vmax.f32 %v2686, 0.0
    %v2696 = vpack.c.bf16 %v2690, %v2690
    %v2697 = vpack.c.bf16 %v2691, %v2691
    %v2698 = vpack.c.bf16 %v2692, %v2692
    %v2699 = vpack.c.bf16 %v2693, %v2693
    %v2700 = vpack.c.bf16 %v2694, %v2694
    %v2701 = vpack.c.bf16 %v2695, %v2695
    %v2702 = vld [vmem:[#allocation11] sm:$0xf]
    %v2703 = vld [vmem:[#allocation11 + $0x4] sm:$0xf]
    %v2704 = vld [vmem:[#allocation11 + $0x8] sm:$0xf]
    %v2705 = vld [vmem:[#allocation11 + $0xc] sm:$0xf]
    %v2706 = vld [vmem:[#allocation11 + $0x10] sm:$0xf]
    %v2707 = vld [vmem:[#allocation11 + $0x14] sm:$0xf]
    %v2708 = vld [vmem:[#allocation11 + $0x18] sm:$0xf]
    %v2709 = vld [vmem:[#allocation11 + $0x1c] sm:$0xf]
    %v2710 = vld [vmem:[#allocation11 + $0x20] sm:$0xf]
    %v2711 = vld [vmem:[#allocation11 + $0x24] sm:$0xf]
    %v2712 = vld [vmem:[#allocation11 + $0x28] sm:$0xf]
    %v2713 = vld [vmem:[#allocation11 + $0x2c] sm:$0xf]
    %v2714 = vld [vmem:[#allocation11 + $0x30] sm:$0xf]
    %v2715 = vld [vmem:[#allocation11 + $0x34] sm:$0xf]
    %v2716 = vld [vmem:[#allocation11 + $0x38] sm:$0xf]
    %v2717 = vld [vmem:[#allocation11 + $0x3c] sm:$0xf]
    %v2718 = vld [vmem:[#allocation11 + $0x40] sm:$0xf]
    %v2719 = vld [vmem:[#allocation11 + $0x44] sm:$0xf]
    %v2720 = vld [vmem:[#allocation11 + $0x48] sm:$0xf]
    %v2721 = vld [vmem:[#allocation11 + $0x4c] sm:$0xf]
    %v2722 = vld [vmem:[#allocation11 + $0x50] sm:$0xf]
    %v2723 = vld [vmem:[#allocation11 + $0x54] sm:$0xf]
    %v2724 = vld [vmem:[#allocation11 + $0x58] sm:$0xf]
    %v2725 = vld [vmem:[#allocation11 + $0x5c] sm:$0xf]
    %v2726 = vld [vmem:[#allocation11 + $0x60] sm:$0xf]
    %v2727 = vld [vmem:[#allocation11 + $0x64] sm:$0xf]
    %v2728 = vld [vmem:[#allocation11 + $0x68] sm:$0xf]
    %v2729 = vld [vmem:[#allocation11 + $0x6c] sm:$0xf]
    %v2730 = vld [vmem:[#allocation11 + $0x70] sm:$0xf]
    %v2731 = vld [vmem:[#allocation11 + $0x74] sm:$0xf]
    %v2732 = vld [vmem:[#allocation11 + $0x78] sm:$0xf]
    %v2733 = vld [vmem:[#allocation11 + $0x7c] sm:$0xf]
    %v2734 = vld [vmem:[#allocation11 + $0x80] sm:$0xf]
    %v2735 = vld [vmem:[#allocation11 + $0x84] sm:$0xf]
    %v2736 = vld [vmem:[#allocation11 + $0x88] sm:$0xf]
    %v2737 = vld [vmem:[#allocation11 + $0x8c] sm:$0xf]
    %v2738 = vld [vmem:[#allocation11 + $0x90] sm:$0xf]
    %v2739 = vld [vmem:[#allocation11 + $0x94] sm:$0xf]
    %v2740 = vld [vmem:[#allocation11 + $0x98] sm:$0xf]
    %v2741 = vld [vmem:[#allocation11 + $0x9c] sm:$0xf]
    %v2742 = vld [vmem:[#allocation11 + $0xa0] sm:$0xf]
    %v2743 = vld [vmem:[#allocation11 + $0xa4] sm:$0xf]
    %v2744 = vld [vmem:[#allocation11 + $0xa8] sm:$0xf]
    %v2745 = vld [vmem:[#allocation11 + $0xac] sm:$0xf]
    %v2746 = vld [vmem:[#allocation11 + $0xb0] sm:$0xf]
    %v2747 = vld [vmem:[#allocation11 + $0xb4] sm:$0xf]
    %v2748 = vld [vmem:[#allocation11 + $0xb8] sm:$0xf]
    %v2749 = vld [vmem:[#allocation11 + $0xbc] sm:$0xf]
    %v2750 = vld [vmem:[#allocation11 + $0xc0] sm:$0xf]
    %v2751 = vld [vmem:[#allocation11 + $0xc4] sm:$0xf]
    %v2752 = vld [vmem:[#allocation11 + $0xc8] sm:$0xf]
    %v2753 = vld [vmem:[#allocation11 + $0xcc] sm:$0xf]
    %v2754 = vld [vmem:[#allocation11 + $0xd0] sm:$0xf]
    %v2755 = vld [vmem:[#allocation11 + $0xd4] sm:$0xf]
    %v2756 = vld [vmem:[#allocation11 + $0xd8] sm:$0xf]
    %v2757 = vld [vmem:[#allocation11 + $0xdc] sm:$0xf]
    %v2758 = vld [vmem:[#allocation11 + $0xe0] sm:$0xf]
    %v2759 = vld [vmem:[#allocation11 + $0xe4] sm:$0xf]
    %v2760 = vld [vmem:[#allocation11 + $0xe8] sm:$0xf]
    %v2761 = vld [vmem:[#allocation11 + $0xec] sm:$0xf]
    %v2762 = vld [vmem:[#allocation11 + $0xf0] sm:$0xf]
    %v2763 = vld [vmem:[#allocation11 + $0xf4] sm:$0xf]
    %v2764 = vld [vmem:[#allocation11 + $0xf8] sm:$0xf]
    %v2765 = vld [vmem:[#allocation11 + $0xfc] sm:$0xf]
    %v2766 = vld [vmem:[#allocation11 + $0x100] sm:$0xf]
    %v2767 = vld [vmem:[#allocation11 + $0x104] sm:$0xf]
    %v2768 = vld [vmem:[#allocation11 + $0x108] sm:$0xf]
    %v2769 = vld [vmem:[#allocation11 + $0x10c] sm:$0xf]
    %v2770 = vld [vmem:[#allocation11 + $0x110] sm:$0xf]
    %v2771 = vld [vmem:[#allocation11 + $0x114] sm:$0xf]
    %v2772 = vld [vmem:[#allocation11 + $0x118] sm:$0xf]
    %v2773 = vld [vmem:[#allocation11 + $0x11c] sm:$0xf]
    %v2774 = vld [vmem:[#allocation11 + $0x120] sm:$0xf]
    %v2775 = vld [vmem:[#allocation11 + $0x124] sm:$0xf]
    %v2776 = vld [vmem:[#allocation11 + $0x128] sm:$0xf]
    %v2777 = vld [vmem:[#allocation11 + $0x12c] sm:$0xf]
    %v2778 = vld [vmem:[#allocation11 + $0x130] sm:$0xf]
    %v2779 = vld [vmem:[#allocation11 + $0x134] sm:$0xf]
    %v2780 = vld [vmem:[#allocation11 + $0x138] sm:$0xf]
    %v2781 = vld [vmem:[#allocation11 + $0x13c] sm:$0xf]
    %v2782 = vld [vmem:[#allocation11 + $0x140] sm:$0xf]
    %v2783 = vld [vmem:[#allocation11 + $0x144] sm:$0xf]
    %v2784 = vld [vmem:[#allocation11 + $0x148] sm:$0xf]
    %v2785 = vld [vmem:[#allocation11 + $0x14c] sm:$0xf]
    %v2786 = vld [vmem:[#allocation11 + $0x150] sm:$0xf]
    %v2787 = vld [vmem:[#allocation11 + $0x154] sm:$0xf]
    %v2788 = vld [vmem:[#allocation11 + $0x158] sm:$0xf]
    %v2789 = vld [vmem:[#allocation11 + $0x15c] sm:$0xf]
    %v2790 = vld [vmem:[#allocation11 + $0x160] sm:$0xf]
    %v2791 = vld [vmem:[#allocation11 + $0x164] sm:$0xf]
    %v2792 = vld [vmem:[#allocation11 + $0x168] sm:$0xf]
    %v2793 = vld [vmem:[#allocation11 + $0x16c] sm:$0xf]
    %v2794 = vld [vmem:[#allocation11 + $0x170] sm:$0xf]
    %v2795 = vld [vmem:[#allocation11 + $0x174] sm:$0xf]
    %v2796 = vld [vmem:[#allocation11 + $0x178] sm:$0xf]
    %v2797 = vld [vmem:[#allocation11 + $0x17c] sm:$0xf]
    %v2894 = vunpack.c.l.b16 %v2702
    %v2895 = vunpack.c.l.b16 %v2703
    %v2896 = vunpack.c.l.b16 %v2704
    %v2897 = vunpack.c.l.b16 %v2705
    %v2898 = vunpack.c.l.b16 %v2706
    %v2899 = vunpack.c.l.b16 %v2707
    %v2900 = vunpack.c.l.b16 %v2708
    %v2901 = vunpack.c.l.b16 %v2709
    %v2902 = vunpack.c.l.b16 %v2710
    %v2903 = vunpack.c.l.b16 %v2711
    %v2904 = vunpack.c.l.b16 %v2712
    %v2905 = vunpack.c.l.b16 %v2713
    %v2906 = vunpack.c.l.b16 %v2714
    %v2907 = vunpack.c.l.b16 %v2715
    %v2908 = vunpack.c.l.b16 %v2716
    %v2909 = vunpack.c.l.b16 %v2717
    %v2910 = vunpack.c.l.b16 %v2718
    %v2911 = vunpack.c.l.b16 %v2719
    %v2912 = vunpack.c.l.b16 %v2720
    %v2913 = vunpack.c.l.b16 %v2721
    %v2914 = vunpack.c.l.b16 %v2722
    %v2915 = vunpack.c.l.b16 %v2723
    %v2916 = vunpack.c.l.b16 %v2724
    %v2917 = vunpack.c.l.b16 %v2725
    %v2918 = vunpack.c.l.b16 %v2726
    %v2919 = vunpack.c.l.b16 %v2727
    %v2920 = vunpack.c.l.b16 %v2728
    %v2921 = vunpack.c.l.b16 %v2729
    %v2922 = vunpack.c.l.b16 %v2730
    %v2923 = vunpack.c.l.b16 %v2731
    %v2924 = vunpack.c.l.b16 %v2732
    %v2925 = vunpack.c.l.b16 %v2733
    %v2926 = vunpack.c.l.b16 %v2734
    %v2927 = vunpack.c.l.b16 %v2735
    %v2928 = vunpack.c.l.b16 %v2736
    %v2929 = vunpack.c.l.b16 %v2737
    %v2930 = vunpack.c.l.b16 %v2738
    %v2931 = vunpack.c.l.b16 %v2739
    %v2932 = vunpack.c.l.b16 %v2740
    %v2933 = vunpack.c.l.b16 %v2741
    %v2934 = vunpack.c.l.b16 %v2742
    %v2935 = vunpack.c.l.b16 %v2743
    %v2936 = vunpack.c.l.b16 %v2744
    %v2937 = vunpack.c.l.b16 %v2745
    %v2938 = vunpack.c.l.b16 %v2746
    %v2939 = vunpack.c.l.b16 %v2747
    %v2940 = vunpack.c.l.b16 %v2748
    %v2941 = vunpack.c.l.b16 %v2749
    %v2942 = vunpack.c.l.b16 %v2750
    %v2943 = vunpack.c.l.b16 %v2751
    %v2944 = vunpack.c.l.b16 %v2752
    %v2945 = vunpack.c.l.b16 %v2753
    %v2946 = vunpack.c.l.b16 %v2754
    %v2947 = vunpack.c.l.b16 %v2755
    %v2948 = vunpack.c.l.b16 %v2756
    %v2949 = vunpack.c.l.b16 %v2757
    %v2950 = vunpack.c.l.b16 %v2758
    %v2951 = vunpack.c.l.b16 %v2759
    %v2952 = vunpack.c.l.b16 %v2760
    %v2953 = vunpack.c.l.b16 %v2761
    %v2954 = vunpack.c.l.b16 %v2762
    %v2955 = vunpack.c.l.b16 %v2763
    %v2956 = vunpack.c.l.b16 %v2764
    %v2957 = vunpack.c.l.b16 %v2765
    %v2958 = vunpack.c.l.b16 %v2766
    %v2959 = vunpack.c.l.b16 %v2767
    %v2960 = vunpack.c.l.b16 %v2768
    %v2961 = vunpack.c.l.b16 %v2769
    %v2962 = vunpack.c.l.b16 %v2770
    %v2963 = vunpack.c.l.b16 %v2771
    %v2964 = vunpack.c.l.b16 %v2772
    %v2965 = vunpack.c.l.b16 %v2773
    %v2966 = vunpack.c.l.b16 %v2774
    %v2967 = vunpack.c.l.b16 %v2775
    %v2968 = vunpack.c.l.b16 %v2776
    %v2969 = vunpack.c.l.b16 %v2777
    %v2970 = vunpack.c.l.b16 %v2778
    %v2971 = vunpack.c.l.b16 %v2779
    %v2972 = vunpack.c.l.b16 %v2780
    %v2973 = vunpack.c.l.b16 %v2781
    %v2974 = vunpack.c.l.b16 %v2782
    %v2975 = vunpack.c.l.b16 %v2783
    %v2976 = vunpack.c.l.b16 %v2784
    %v2977 = vunpack.c.l.b16 %v2785
    %v2978 = vunpack.c.l.b16 %v2786
    %v2979 = vunpack.c.l.b16 %v2787
    %v2980 = vunpack.c.l.b16 %v2788
    %v2981 = vunpack.c.l.b16 %v2789
    %v2982 = vunpack.c.l.b16 %v2790
    %v2983 = vunpack.c.l.b16 %v2791
    %v2984 = vunpack.c.l.b16 %v2792
    %v2985 = vunpack.c.l.b16 %v2793
    %v2986 = vunpack.c.l.b16 %v2794
    %v2987 = vunpack.c.l.b16 %v2795
    %v2988 = vunpack.c.l.b16 %v2796
    %v2989 = vunpack.c.l.b16 %v2797
    %v2990 = vpack.c.b16 %v2895, %v2894
    %v2991 = vpack.c.b16 %v2897, %v2896
    %v2992 = vpack.c.b16 %v2899, %v2898
    %v2993 = vpack.c.b16 %v2901, %v2900
    %v2994 = vpack.c.b16 %v2903, %v2902
    %v2995 = vpack.c.b16 %v2905, %v2904
    %v2996 = vpack.c.b16 %v2907, %v2906
    %v2997 = vpack.c.b16 %v2909, %v2908
    %v2998 = vpack.c.b16 %v2911, %v2910
    %v2999 = vpack.c.b16 %v2913, %v2912
    %v3000 = vpack.c.b16 %v2915, %v2914
    %v3001 = vpack.c.b16 %v2917, %v2916
    %v3002 = vpack.c.b16 %v2919, %v2918
    %v3003 = vpack.c.b16 %v2921, %v2920
    %v3004 = vpack.c.b16 %v2923, %v2922
    %v3005 = vpack.c.b16 %v2925, %v2924
    %v3006 = vpack.c.b16 %v2927, %v2926
    %v3007 = vpack.c.b16 %v2929, %v2928
    %v3008 = vpack.c.b16 %v2931, %v2930
    %v3009 = vpack.c.b16 %v2933, %v2932
    %v3010 = vpack.c.b16 %v2935, %v2934
    %v3011 = vpack.c.b16 %v2937, %v2936
    %v3012 = vpack.c.b16 %v2939, %v2938
    %v3013 = vpack.c.b16 %v2941, %v2940
    %v3014 = vpack.c.b16 %v2943, %v2942
    %v3015 = vpack.c.b16 %v2945, %v2944
    %v3016 = vpack.c.b16 %v2947, %v2946
    %v3017 = vpack.c.b16 %v2949, %v2948
    %v3018 = vpack.c.b16 %v2951, %v2950
    %v3019 = vpack.c.b16 %v2953, %v2952
    %v3020 = vpack.c.b16 %v2955, %v2954
    %v3021 = vpack.c.b16 %v2957, %v2956
    %v3022 = vpack.c.b16 %v2959, %v2958
    %v3023 = vpack.c.b16 %v2961, %v2960
    %v3024 = vpack.c.b16 %v2963, %v2962
    %v3025 = vpack.c.b16 %v2965, %v2964
    %v3026 = vpack.c.b16 %v2967, %v2966
    %v3027 = vpack.c.b16 %v2969, %v2968
    %v3028 = vpack.c.b16 %v2971, %v2970
    %v3029 = vpack.c.b16 %v2973, %v2972
    %v3030 = vpack.c.b16 %v2975, %v2974
    %v3031 = vpack.c.b16 %v2977, %v2976
    %v3032 = vpack.c.b16 %v2979, %v2978
    %v3033 = vpack.c.b16 %v2981, %v2980
    %v3034 = vpack.c.b16 %v2983, %v2982
    %v3035 = vpack.c.b16 %v2985, %v2984
    %v3036 = vpack.c.b16 %v2987, %v2986
    %v3037 = vpack.c.b16 %v2989, %v2988
    %3086 = vmatprep.subr.bf16.mxu0 0
    %3087 = vmatpush1.bf16.msra.mxu0 %v2997
    %3088 = vmatprep.subr.bf16.mxu0 0
    %3089 = vmatpush1.bf16.msra.mxu0 %v2996
    %3090 = vmatprep.subr.bf16.mxu0 0
    %3091 = vmatpush1.bf16.msra.mxu0 %v2995
    %3092 = vmatprep.subr.bf16.mxu0 0
    %3093 = vmatpush1.bf16.msra.mxu0 %v2994
    %3094 = vmatprep.subr.bf16.mxu0 0
    %3095 = vmatpush1.bf16.msra.mxu0 %v2993
    %3096 = vmatprep.subr.bf16.mxu0 0
    %3097 = vmatpush1.bf16.msra.mxu0 %v2992
    %3098 = vmatprep.subr.bf16.mxu0 0
    %3099 = vmatpush1.bf16.msra.mxu0 %v2991
    %3100 = vmatprep.subr.bf16.mxu0 0
    %3101 = vmatpush1.bf16.msra.mxu0 %v2990
    %3102 = vmatprep.subr.bf16.mxu0 0
    %3103 = vmatpush2.bf16.msra.mxu0 %v3005
    %3104 = vmatprep.subr.bf16.mxu0 0
    %3105 = vmatpush2.bf16.msra.mxu0 %v3004
    %3106 = vmatprep.subr.bf16.mxu0 0
    %3107 = vmatpush2.bf16.msra.mxu0 %v3003
    %3108 = vmatprep.subr.bf16.mxu0 0
    %3109 = vmatpush2.bf16.msra.mxu0 %v3002
    %3110 = vmatprep.subr.bf16.mxu0 0
    %3111 = vmatpush2.bf16.msra.mxu0 %v3001
    %3112 = vmatprep.subr.bf16.mxu0 0
    %3113 = vmatpush2.bf16.msra.mxu0 %v3000
    %3114 = vmatprep.subr.bf16.mxu0 0
    %3115 = vmatpush2.bf16.msra.mxu0 %v2999
    %3116 = vmatprep.subr.bf16.mxu0 0
    %3117 = vmatpush2.bf16.msra.mxu0 %v2998
    %3118 = vmatprep.mubr.bf16.mxu0 %v2697
    %3119 = vmatmul.mubr.bf16.gmra.mxu0 %v2696
    %v3120 = vpop.f32.mrf.mxu0
    %v3121 = vadd.f32 0.0, %v3120
    %v3122 = vpop.f32.mrf.mxu0
    %v3123 = vpop.f32.mrf.mxu0
    %v3124 = vpop.f32.mrf.mxu0
    %3125 = vdwg.mxu0
    %3126 = vmatprep.subr.bf16.mxu0 0
    %3127 = vmatpush1.bf16.msra.mxu0 %v3013
    %3128 = vmatprep.subr.bf16.mxu0 0
    %3129 = vmatpush1.bf16.msra.mxu0 %v3012
    %3130 = vmatprep.subr.bf16.mxu0 0
    %3131 = vmatpush1.bf16.msra.mxu0 %v3011
    %3132 = vmatprep.subr.bf16.mxu0 0
    %3133 = vmatpush1.bf16.msra.mxu0 %v3010
    %3134 = vmatprep.subr.bf16.mxu0 0
    %3135 = vmatpush1.bf16.msra.mxu0 %v3009
    %3136 = vmatprep.subr.bf16.mxu0 0
    %3137 = vmatpush1.bf16.msra.mxu0 %v3008
    %3138 = vmatprep.subr.bf16.mxu0 0
    %3139 = vmatpush1.bf16.msra.mxu0 %v3007
    %3140 = vmatprep.subr.bf16.mxu0 0
    %3141 = vmatpush1.bf16.msra.mxu0 %v3006
    %3142 = vmatprep.subr.bf16.mxu0 0
    %3143 = vmatpush2.bf16.msra.mxu0 %v3021
    %3144 = vmatprep.subr.bf16.mxu0 0
    %3145 = vmatpush2.bf16.msra.mxu0 %v3020
    %3146 = vmatprep.subr.bf16.mxu0 0
    %3147 = vmatpush2.bf16.msra.mxu0 %v3019
    %3148 = vmatprep.subr.bf16.mxu0 0
    %3149 = vmatpush2.bf16.msra.mxu0 %v3018
    %3150 = vmatprep.subr.bf16.mxu0 0
    %3151 = vmatpush2.bf16.msra.mxu0 %v3017
    %3152 = vmatprep.subr.bf16.mxu0 0
    %3153 = vmatpush2.bf16.msra.mxu0 %v3016
    %3154 = vmatprep.subr.bf16.mxu0 0
    %3155 = vmatpush2.bf16.msra.mxu0 %v3015
    %3156 = vmatprep.subr.bf16.mxu0 0
    %3157 = vmatpush2.bf16.msra.mxu0 %v3014
    %3158 = vmatprep.mubr.bf16.mxu0 %v2699
    %3159 = vmatmul.mubr.bf16.gmra.mxu0 %v2698
    %v3160 = vpop.f32.mrf.mxu0
    %v3161 = vadd.f32 %v3121, %v3160
    %v3162 = vpop.f32.mrf.mxu0
    %v3163 = vpop.f32.mrf.mxu0
    %v3164 = vpop.f32.mrf.mxu0
    %3165 = vdwg.mxu0
    %3166 = vmatprep.subr.bf16.mxu0 0
    %3167 = vmatpush1.bf16.msra.mxu0 %v3029
    %3168 = vmatprep.subr.bf16.mxu0 0
    %3169 = vmatpush1.bf16.msra.mxu0 %v3028
    %3170 = vmatprep.subr.bf16.mxu0 0
    %3171 = vmatpush1.bf16.msra.mxu0 %v3027
    %3172 = vmatprep.subr.bf16.mxu0 0
    %3173 = vmatpush1.bf16.msra.mxu0 %v3026
    %3174 = vmatprep.subr.bf16.mxu0 0
    %3175 = vmatpush1.bf16.msra.mxu0 %v3025
    %3176 = vmatprep.subr.bf16.mxu0 0
    %3177 = vmatpush1.bf16.msra.mxu0 %v3024
    %3178 = vmatprep.subr.bf16.mxu0 0
    %3179 = vmatpush1.bf16.msra.mxu0 %v3023
    %3180 = vmatprep.subr.bf16.mxu0 0
    %3181 = vmatpush1.bf16.msra.mxu0 %v3022
    %3182 = vmatprep.subr.bf16.mxu0 0
    %3183 = vmatpush2.bf16.msra.mxu0 %v3037
    %3184 = vmatprep.subr.bf16.mxu0 0
    %3185 = vmatpush2.bf16.msra.mxu0 %v3036
    %3186 = vmatprep.subr.bf16.mxu0 0
    %3187 = vmatpush2.bf16.msra.mxu0 %v3035
    %3188 = vmatprep.subr.bf16.mxu0 0
    %3189 = vmatpush2.bf16.msra.mxu0 %v3034
    %3190 = vmatprep.subr.bf16.mxu0 0
    %3191 = vmatpush2.bf16.msra.mxu0 %v3033
    %3192 = vmatprep.subr.bf16.mxu0 0
    %3193 = vmatpush2.bf16.msra.mxu0 %v3032
    %3194 = vmatprep.subr.bf16.mxu0 0
    %3195 = vmatpush2.bf16.msra.mxu0 %v3031
    %3196 = vmatprep.subr.bf16.mxu0 0
    %3197 = vmatpush2.bf16.msra.mxu0 %v3030
    %3198 = vmatprep.mubr.bf16.mxu0 %v2701
    %3199 = vmatmul.mubr.bf16.gmra.mxu0 %v2700
    %v3200 = vpop.f32.mrf.mxu0
    %v3201 = vadd.f32 %v3161, %v3200
    %v3202 = vpop.f32.mrf.mxu0
    %v3203 = vpop.f32.mrf.mxu0
    %v3204 = vpop.f32.mrf.mxu0
    %3205 = vdwg.mxu0
    %v3206 = vld [vmem:[#allocation2] sm:$0x1]
    %v3208 = vlaneseq
    %v3209 = vshrl.u32 %v3208, 7
    %v3210 = vsub.s32 0, %v3209
    %v3211 = vrot.slane %v3206, %v3210
    %v3213 = vadd.f32 %v3201, %v3211
    %vm3214 = vcmask 7168
    %3215 = vst.msk [vmem:[%s7] sm:$0xff] %vm3214, %v3213
    // Predicated region
    $region54: #{tpu_custom_call.1} parent=1 // pred_check
      _
    $region55: #{tpu_custom_call.1} parent=1 // pred_check_branch
      %3217 = sbr.rel (0) target = $region57
    $region56: #{tpu_custom_call.1} parent=1 // pred_region
      _
    $region57: #{tpu_custom_call.1} parent=1 // pred_fallthru
      _
    // Predicated region
    $region58: #{tpu_custom_call.1} parent=1 // pred_check
      _
    $region59: #{tpu_custom_call.1} parent=1 // pred_check_branch
      %3219 = sbr.rel (0) target = $region61
    $region60: #{tpu_custom_call.1} parent=1 // pred_region
      _
    $region61: #{tpu_custom_call.1} parent=1 // pred_fallthru
      _
    %3220 = vsyncpa [#allocation4], 1
    %3221 = vsyncpa [#allocation6], 1
    %3222 = vsyncpa [#allocation9], 1
    %3223 = vsyncpa [#allocation12], 1

</llo_original>
